<compile_context>
chip_gen: v7x
topology: tpu7x:2x2x1
jax: 0.10.0
libtpu: 0.0.40
codegen_flags: <defaults>
</compile_context>

<pallas_src>
import jax
import jax.numpy as jnp
from jax import lax
from jax.experimental import pallas as pl
from jax.experimental.pallas import tpu as pltpu

EPS = 1e-5


def lora_merge_kernel(params_ref, base_ref, lora_ref, out_ref):
    params = params_ref[...].astype(jnp.float32)       # (9, D)
    w_base  = params[0:1, :]
    w_lora  = params[1:2, :]
    w_cross = params[2:3, :]
    w_out   = params[3:4, :]
    bias    = params[4:5, :]
    g_base  = params[5:6, :]
    b_base  = params[6:7, :]
    g_lora  = params[7:8, :]
    b_lora  = params[8:9, :]

    tm, D = base_ref.shape
    inv_d = 1.0 / D
    L = lora_ref.shape[0]

    # --- LayerNorm(base): single-pass moments (sum and sum-of-squares). ---
    base = base_ref[...].astype(jnp.float32)            # (tm, D), dies after nb
    mean_b = jnp.sum(base, axis=-1, keepdims=True) * inv_d
    msq_b  = jnp.sum(base * base, axis=-1, keepdims=True) * inv_d
    var_b  = jnp.maximum(msq_b - mean_b * mean_b, 0.0)
    nb = (base - mean_b) * lax.rsqrt(var_b + EPS) * g_base + b_base

    # --- Gate algebra hoisted out of the L loop, with the LoRA LN affine
    #     folded in so the normalized lora value is never formed:
    #       gate_arg = nb*w_base + nl*w_lora + nb*nl*w_cross + bias
    #                = pre2 + xn * coef2,  xn = (x - mean) * rsqrt(var + eps)
    pre   = nb * w_base + bias                           # (tm, D)
    coef  = w_lora + nb * w_cross                        # (tm, D)
    pre2  = pre + coef * b_lora                          # (tm, D)
    coef2 = coef * g_lora                                # (tm, D)
    # base / nb / pre / coef are dead past this point.

    def body(l, acc):
        x = lora_ref[l].astype(jnp.float32)              # (tm, D)
        mean = jnp.sum(x, axis=-1, keepdims=True) * inv_d
        msq  = jnp.sum(x * x, axis=-1, keepdims=True) * inv_d
        var  = jnp.maximum(msq - mean * mean, 0.0)
        xn   = (x - mean) * lax.rsqrt(var + EPS)
        garg = pre2 + xn * coef2
        gate = 0.5 * jnp.tanh(0.5 * garg) + 0.5          # sigmoid, 1 EUP op
        return acc + gate * x

    acc = lax.fori_loop(0, L, body, jnp.zeros((tm, D), jnp.float32),
                        unroll=min(L, 4))

    # Re-read the (VMEM-resident) base tile instead of keeping it live above.
    out_ref[...] = (base_ref[...].astype(jnp.float32) + w_out * acc).astype(
        out_ref.dtype)


def _vmem_capacity_bytes():
    try:
        return int(pltpu.get_tpu_info().vmem_capacity_bytes)
    except Exception:
        return 64 << 20   # conservative (v7x per-TC capacity)


def lora_merger(base_flat, lora_flat, params, *, tm=None):
    """base_flat: (N, D); lora_flat: (L, N, D); params: (9, D)."""
    N, D = base_flat.shape
    L = lora_flat.shape[0]
    itemsize = jnp.dtype(base_flat.dtype).itemsize
    row_mult = 8 * max(1, 4 // itemsize)        # 8 rows (f32) / 16 rows (bf16)
    n_ceil = pl.cdiv(N, row_mult) * row_mult

    vmem_cap = _vmem_capacity_bytes()
    vmem_budget = max(16 << 20, vmem_cap - (16 << 20))

    # Per-row VMEM bytes per pipeline step: double-buffered input/output tiles
    # plus the in-kernel f32 working set (acc, pre2, coef2, x and temps ~ 6).
    per_row_bytes = 2 * (L + 2) * D * itemsize + 6 * D * 4

    if tm is None:
        tm = vmem_budget // max(per_row_bytes, 1)
        tm = min(tm, 512)                       # ~85% of roofline at 512 rows
        if N >= 8 * row_mult:
            tm = min(tm, N // 8)                # >= 8 steps (>= 4 per TC on v7x)
        tm = min(tm, n_ceil)                    # don't exceed the array
        tm = max(row_mult, (tm // row_mult) * row_mult)
    else:
        tm = max(row_mult, (min(tm, n_ceil) // row_mult) * row_mult)

    grid_n = pl.cdiv(N, tm)                     # ragged last tile handled by Pallas

    # Estimated pipelined VMEM footprint; cap below physical per-core capacity.
    est = 2 * (L + 2) * tm * D * itemsize + 6 * tm * D * 4 + 2 * 9 * D * 4
    vmem_limit = int(min(vmem_cap - (12 << 20),
                         max(int(1.25 * est), 32 << 20)))
    vmem_limit = max(vmem_limit, 16 << 20)

    return pl.pallas_call(
        lora_merge_kernel,
        out_shape=jax.ShapeDtypeStruct((N, D), base_flat.dtype),
        grid_spec=pltpu.PrefetchScalarGridSpec(
            num_scalar_prefetch=0,
            grid=(grid_n,),
            in_specs=[
                pl.BlockSpec((9, D), lambda i: (0, 0)),         # params (replicated)
                pl.BlockSpec((tm, D), lambda i: (i, 0)),        # base rows tile
                pl.BlockSpec((L, tm, D), lambda i: (0, i, 0)),  # all LoRAs, same rows
            ],
            out_specs=pl.BlockSpec((tm, D), lambda i: (i, 0)),
        ),
        compiler_params=pltpu.CompilerParams(
            dimension_semantics=("parallel",),
            vmem_limit_bytes=vmem_limit,
        ),
    )(params, base_flat, lora_flat)


def reference(base, lora, params):
    (w_base, w_lora, w_cross, w_out, bias,
     g_base, b_base, g_lora, b_lora) = [params[i] for i in range(9)]

    def ln(x, g, b):
        m = jnp.mean(x, axis=-1, keepdims=True)
        v = jnp.mean((x - m) ** 2, axis=-1, keepdims=True)
        return (x - m) * lax.rsqrt(v + EPS) * g + b

    nb = ln(base, g_base, b_base)
    nl = ln(lora, g_lora, b_lora)
    gate = jax.nn.sigmoid(nb * w_base + nl * w_lora + nb * nl * w_cross + bias)
    return base + jnp.sum(w_out * gate * lora, axis=0)


if __name__ == "__main__":
    # Small shapes consistent with the module: L stacked LoRA outputs over a
    # (batch, seq, dim) base activation.
    B, S, D, L = 2, 256, 256, 3
    key = jax.random.PRNGKey(0)
    k_base, k_lora, k_wb, k_wl, k_wc, k_bias = jax.random.split(key, 6)

    base = jax.random.normal(k_base, (B, S, D), dtype=jnp.float32)
    lora = jax.random.normal(k_lora, (L, B, S, D), dtype=jnp.float32)

    # Deterministic parameter init mirroring the module's __init__:
    #   weight_base/lora/cross ~ randn, weight_out = ones, bias ~ randn,
    #   LayerNorm affine defaults: gamma = ones, beta = zeros.
    params = jnp.stack([
        jax.random.normal(k_wb, (D,), dtype=jnp.float32),    # weight_base
        jax.random.normal(k_wl, (D,), dtype=jnp.float32),    # weight_lora
        jax.random.normal(k_wc, (D,), dtype=jnp.float32),    # weight_cross
        jnp.ones((D,), dtype=jnp.float32),                   # weight_out
        jax.random.normal(k_bias, (D,), dtype=jnp.float32),  # bias
        jnp.ones((D,), dtype=jnp.float32),                   # norm_base gamma
        jnp.zeros((D,), dtype=jnp.float32),                  # norm_base beta
        jnp.ones((D,), dtype=jnp.float32),                   # norm_lora gamma
        jnp.zeros((D,), dtype=jnp.float32),                  # norm_lora beta
    ], axis=0)                                               # (9, D)

    base_flat = base.reshape(B * S, D)
    lora_flat = lora.reshape(L, B * S, D)

    out_flat = lora_merger(base_flat, lora_flat, params)
    out = out_flat.reshape(B, S, D)
    jax.block_until_ready(out)

    ref = reference(base_flat, lora_flat, params).reshape(B, S, D)
    assert jnp.allclose(out, ref, atol=1e-4, rtol=1e-4), "mismatch vs reference"

    print("KERNEL_OK")
</pallas_src>

<mosaic_0001>
module attributes {stable_mosaic.version = 11 : i64} {
  func.func @lora_merge_kernel(%arg0: i32, %arg1: memref<9x256xf32, #tpu.memory_space<vmem>>, %arg2: memref<64x256xf32, #tpu.memory_space<vmem>>, %arg3: memref<3x64x256xf32, #tpu.memory_space<vmem>>, %arg4: memref<64x256xf32, #tpu.memory_space<vmem>>) attributes {dimension_semantics = [#tpu.dimension_semantics<parallel>], iteration_bounds = array<i64: 8>, scalar_prefetch = 0 : i64, scratch_operands = 0 : i64, tpu.core_type = #tpu.core_type<tc>, window_params = [{pipeline_mode = #tpu.pipeline_mode<synchronous>, transform_indices = @transform_0, window_bounds = array<i64: 9, 256>}, {transform_indices = @transform_1, window_bounds = array<i64: 64, 256>}, {transform_indices = @transform_2, window_bounds = array<i64: 3, 64, 256>}, {transform_indices = @transform_3, window_bounds = array<i64: 64, 256>}]} {
    %c0 = arith.constant 0 : index
    %c0_0 = arith.constant 0 : index
    %0 = vector.load %arg1[%c0, %c0_0] : memref<9x256xf32, #tpu.memory_space<vmem>>, vector<9x256xf32>
    %1 = vector.extract_strided_slice %0 {offsets = [0, 0], sizes = [1, 256], strides = [1, 1]} : vector<9x256xf32> to vector<1x256xf32>
    %2 = vector.extract_strided_slice %0 {offsets = [1, 0], sizes = [1, 256], strides = [1, 1]} : vector<9x256xf32> to vector<1x256xf32>
    %3 = vector.extract_strided_slice %0 {offsets = [2, 0], sizes = [1, 256], strides = [1, 1]} : vector<9x256xf32> to vector<1x256xf32>
    %4 = vector.extract_strided_slice %0 {offsets = [3, 0], sizes = [1, 256], strides = [1, 1]} : vector<9x256xf32> to vector<1x256xf32>
    %5 = vector.extract_strided_slice %0 {offsets = [4, 0], sizes = [1, 256], strides = [1, 1]} : vector<9x256xf32> to vector<1x256xf32>
    %6 = vector.extract_strided_slice %0 {offsets = [5, 0], sizes = [1, 256], strides = [1, 1]} : vector<9x256xf32> to vector<1x256xf32>
    %7 = vector.extract_strided_slice %0 {offsets = [6, 0], sizes = [1, 256], strides = [1, 1]} : vector<9x256xf32> to vector<1x256xf32>
    %8 = vector.extract_strided_slice %0 {offsets = [7, 0], sizes = [1, 256], strides = [1, 1]} : vector<9x256xf32> to vector<1x256xf32>
    %9 = vector.extract_strided_slice %0 {offsets = [8, 0], sizes = [1, 256], strides = [1, 1]} : vector<9x256xf32> to vector<1x256xf32>
    %c0_1 = arith.constant 0 : index
    %c0_2 = arith.constant 0 : index
    %10 = vector.load %arg2[%c0_1, %c0_2] : memref<64x256xf32, #tpu.memory_space<vmem>>, vector<64x256xf32>
    %cst = arith.constant dense<0.000000e+00> : vector<64xf32>
    %11 = vector.multi_reduction <add>, %10, %cst [1] : vector<64x256xf32> to vector<64xf32>
    %12 = vector.shape_cast %11 : vector<64xf32> to vector<64x1xf32>
    %cst_3 = arith.constant 3.906250e-03 : f32
    %13 = vector.broadcast %cst_3 : f32 to vector<64x1xf32>
    %14 = arith.mulf %12, %13 : vector<64x1xf32>
    %15 = arith.mulf %10, %10 : vector<64x256xf32>
    %cst_4 = arith.constant dense<0.000000e+00> : vector<64xf32>
    %16 = vector.multi_reduction <add>, %15, %cst_4 [1] : vector<64x256xf32> to vector<64xf32>
    %17 = vector.shape_cast %16 : vector<64xf32> to vector<64x1xf32>
    %cst_5 = arith.constant 3.906250e-03 : f32
    %18 = vector.broadcast %cst_5 : f32 to vector<64x1xf32>
    %19 = arith.mulf %17, %18 : vector<64x1xf32>
    %20 = arith.mulf %14, %14 : vector<64x1xf32>
    %21 = arith.subf %19, %20 : vector<64x1xf32>
    %cst_6 = arith.constant 0.000000e+00 : f32
    %22 = vector.broadcast %cst_6 : f32 to vector<64x1xf32>
    %23 = arith.maximumf %21, %22 : vector<64x1xf32>
    %24 = vector.broadcast %14 : vector<64x1xf32> to vector<64x256xf32>
    %25 = arith.subf %10, %24 : vector<64x256xf32>
    %cst_7 = arith.constant 9.99999974E-6 : f32
    %26 = vector.broadcast %cst_7 : f32 to vector<64x1xf32>
    %27 = arith.addf %23, %26 : vector<64x1xf32>
    %28 = math.rsqrt %27 : vector<64x1xf32>
    %29 = vector.broadcast %28 : vector<64x1xf32> to vector<64x256xf32>
    %30 = arith.mulf %25, %29 : vector<64x256xf32>
    %31 = vector.broadcast %6 : vector<1x256xf32> to vector<64x256xf32>
    %32 = arith.mulf %30, %31 : vector<64x256xf32>
    %33 = vector.broadcast %7 : vector<1x256xf32> to vector<64x256xf32>
    %34 = arith.addf %32, %33 : vector<64x256xf32>
    %35 = vector.broadcast %1 : vector<1x256xf32> to vector<64x256xf32>
    %36 = arith.mulf %34, %35 : vector<64x256xf32>
    %37 = vector.broadcast %5 : vector<1x256xf32> to vector<64x256xf32>
    %38 = arith.addf %36, %37 : vector<64x256xf32>
    %39 = vector.broadcast %3 : vector<1x256xf32> to vector<64x256xf32>
    %40 = arith.mulf %34, %39 : vector<64x256xf32>
    %41 = vector.broadcast %2 : vector<1x256xf32> to vector<64x256xf32>
    %42 = arith.addf %41, %40 : vector<64x256xf32>
    %43 = vector.broadcast %9 : vector<1x256xf32> to vector<64x256xf32>
    %44 = arith.mulf %42, %43 : vector<64x256xf32>
    %45 = arith.addf %38, %44 : vector<64x256xf32>
    %46 = vector.broadcast %8 : vector<1x256xf32> to vector<64x256xf32>
    %47 = arith.mulf %42, %46 : vector<64x256xf32>
    %cst_8 = arith.constant 0.000000e+00 : f32
    %48 = vector.broadcast %cst_8 : f32 to vector<64x256xf32>
    %c0_i32 = arith.constant 0 : i32
    %49 = arith.index_cast %c0_i32 : i32 to index
    %c0_9 = arith.constant 0 : index
    %c0_10 = arith.constant 0 : index
    %50 = vector.load %arg3[%49, %c0_9, %c0_10] : memref<3x64x256xf32, #tpu.memory_space<vmem>>, vector<1x64x256xf32>
    %51 = vector.shape_cast %50 : vector<1x64x256xf32> to vector<64x256xf32>
    %cst_11 = arith.constant dense<0.000000e+00> : vector<64xf32>
    %52 = vector.multi_reduction <add>, %51, %cst_11 [1] : vector<64x256xf32> to vector<64xf32>
    %53 = vector.shape_cast %52 : vector<64xf32> to vector<64x1xf32>
    %cst_12 = arith.constant 3.906250e-03 : f32
    %54 = vector.broadcast %cst_12 : f32 to vector<64x1xf32>
    %55 = arith.mulf %53, %54 : vector<64x1xf32>
    %56 = arith.mulf %51, %51 : vector<64x256xf32>
    %cst_13 = arith.constant dense<0.000000e+00> : vector<64xf32>
    %57 = vector.multi_reduction <add>, %56, %cst_13 [1] : vector<64x256xf32> to vector<64xf32>
    %58 = vector.shape_cast %57 : vector<64xf32> to vector<64x1xf32>
    %cst_14 = arith.constant 3.906250e-03 : f32
    %59 = vector.broadcast %cst_14 : f32 to vector<64x1xf32>
    %60 = arith.mulf %58, %59 : vector<64x1xf32>
    %61 = arith.mulf %55, %55 : vector<64x1xf32>
    %62 = arith.subf %60, %61 : vector<64x1xf32>
    %cst_15 = arith.constant 0.000000e+00 : f32
    %63 = vector.broadcast %cst_15 : f32 to vector<64x1xf32>
    %64 = arith.maximumf %62, %63 : vector<64x1xf32>
    %65 = vector.broadcast %55 : vector<64x1xf32> to vector<64x256xf32>
    %66 = arith.subf %51, %65 : vector<64x256xf32>
    %cst_16 = arith.constant 9.99999974E-6 : f32
    %67 = vector.broadcast %cst_16 : f32 to vector<64x1xf32>
    %68 = arith.addf %64, %67 : vector<64x1xf32>
    %69 = math.rsqrt %68 : vector<64x1xf32>
    %70 = vector.broadcast %69 : vector<64x1xf32> to vector<64x256xf32>
    %71 = arith.mulf %66, %70 : vector<64x256xf32>
    %72 = arith.mulf %71, %47 : vector<64x256xf32>
    %73 = arith.addf %45, %72 : vector<64x256xf32>
    %cst_17 = arith.constant 5.000000e-01 : f32
    %74 = vector.broadcast %cst_17 : f32 to vector<64x256xf32>
    %75 = arith.mulf %74, %73 : vector<64x256xf32>
    %76 = math.tanh %75 : vector<64x256xf32>
    %cst_18 = arith.constant 5.000000e-01 : f32
    %77 = vector.broadcast %cst_18 : f32 to vector<64x256xf32>
    %78 = arith.mulf %77, %76 : vector<64x256xf32>
    %cst_19 = arith.constant 5.000000e-01 : f32
    %79 = vector.broadcast %cst_19 : f32 to vector<64x256xf32>
    %80 = arith.addf %78, %79 : vector<64x256xf32>
    %81 = arith.mulf %80, %51 : vector<64x256xf32>
    %82 = arith.addf %48, %81 : vector<64x256xf32>
    %c1_i32 = arith.constant 1 : i32
    %83 = arith.index_cast %c1_i32 : i32 to index
    %c0_20 = arith.constant 0 : index
    %c0_21 = arith.constant 0 : index
    %84 = vector.load %arg3[%83, %c0_20, %c0_21] : memref<3x64x256xf32, #tpu.memory_space<vmem>>, vector<1x64x256xf32>
    %85 = vector.shape_cast %84 : vector<1x64x256xf32> to vector<64x256xf32>
    %cst_22 = arith.constant dense<0.000000e+00> : vector<64xf32>
    %86 = vector.multi_reduction <add>, %85, %cst_22 [1] : vector<64x256xf32> to vector<64xf32>
    %87 = vector.shape_cast %86 : vector<64xf32> to vector<64x1xf32>
    %cst_23 = arith.constant 3.906250e-03 : f32
    %88 = vector.broadcast %cst_23 : f32 to vector<64x1xf32>
    %89 = arith.mulf %87, %88 : vector<64x1xf32>
    %90 = arith.mulf %85, %85 : vector<64x256xf32>
    %cst_24 = arith.constant dense<0.000000e+00> : vector<64xf32>
    %91 = vector.multi_reduction <add>, %90, %cst_24 [1] : vector<64x256xf32> to vector<64xf32>
    %92 = vector.shape_cast %91 : vector<64xf32> to vector<64x1xf32>
    %cst_25 = arith.constant 3.906250e-03 : f32
    %93 = vector.broadcast %cst_25 : f32 to vector<64x1xf32>
    %94 = arith.mulf %92, %93 : vector<64x1xf32>
    %95 = arith.mulf %89, %89 : vector<64x1xf32>
    %96 = arith.subf %94, %95 : vector<64x1xf32>
    %cst_26 = arith.constant 0.000000e+00 : f32
    %97 = vector.broadcast %cst_26 : f32 to vector<64x1xf32>
    %98 = arith.maximumf %96, %97 : vector<64x1xf32>
    %99 = vector.broadcast %89 : vector<64x1xf32> to vector<64x256xf32>
    %100 = arith.subf %85, %99 : vector<64x256xf32>
    %cst_27 = arith.constant 9.99999974E-6 : f32
    %101 = vector.broadcast %cst_27 : f32 to vector<64x1xf32>
    %102 = arith.addf %98, %101 : vector<64x1xf32>
    %103 = math.rsqrt %102 : vector<64x1xf32>
    %104 = vector.broadcast %103 : vector<64x1xf32> to vector<64x256xf32>
    %105 = arith.mulf %100, %104 : vector<64x256xf32>
    %106 = arith.mulf %105, %47 : vector<64x256xf32>
    %107 = arith.addf %45, %106 : vector<64x256xf32>
    %cst_28 = arith.constant 5.000000e-01 : f32
    %108 = vector.broadcast %cst_28 : f32 to vector<64x256xf32>
    %109 = arith.mulf %108, %107 : vector<64x256xf32>
    %110 = math.tanh %109 : vector<64x256xf32>
    %cst_29 = arith.constant 5.000000e-01 : f32
    %111 = vector.broadcast %cst_29 : f32 to vector<64x256xf32>
    %112 = arith.mulf %111, %110 : vector<64x256xf32>
    %cst_30 = arith.constant 5.000000e-01 : f32
    %113 = vector.broadcast %cst_30 : f32 to vector<64x256xf32>
    %114 = arith.addf %112, %113 : vector<64x256xf32>
    %115 = arith.mulf %114, %85 : vector<64x256xf32>
    %116 = arith.addf %82, %115 : vector<64x256xf32>
    %c2_i32 = arith.constant 2 : i32
    %117 = arith.index_cast %c2_i32 : i32 to index
    %c0_31 = arith.constant 0 : index
    %c0_32 = arith.constant 0 : index
    %118 = vector.load %arg3[%117, %c0_31, %c0_32] : memref<3x64x256xf32, #tpu.memory_space<vmem>>, vector<1x64x256xf32>
    %119 = vector.shape_cast %118 : vector<1x64x256xf32> to vector<64x256xf32>
    %cst_33 = arith.constant dense<0.000000e+00> : vector<64xf32>
    %120 = vector.multi_reduction <add>, %119, %cst_33 [1] : vector<64x256xf32> to vector<64xf32>
    %121 = vector.shape_cast %120 : vector<64xf32> to vector<64x1xf32>
    %cst_34 = arith.constant 3.906250e-03 : f32
    %122 = vector.broadcast %cst_34 : f32 to vector<64x1xf32>
    %123 = arith.mulf %121, %122 : vector<64x1xf32>
    %124 = arith.mulf %119, %119 : vector<64x256xf32>
    %cst_35 = arith.constant dense<0.000000e+00> : vector<64xf32>
    %125 = vector.multi_reduction <add>, %124, %cst_35 [1] : vector<64x256xf32> to vector<64xf32>
    %126 = vector.shape_cast %125 : vector<64xf32> to vector<64x1xf32>
    %cst_36 = arith.constant 3.906250e-03 : f32
    %127 = vector.broadcast %cst_36 : f32 to vector<64x1xf32>
    %128 = arith.mulf %126, %127 : vector<64x1xf32>
    %129 = arith.mulf %123, %123 : vector<64x1xf32>
    %130 = arith.subf %128, %129 : vector<64x1xf32>
    %cst_37 = arith.constant 0.000000e+00 : f32
    %131 = vector.broadcast %cst_37 : f32 to vector<64x1xf32>
    %132 = arith.maximumf %130, %131 : vector<64x1xf32>
    %133 = vector.broadcast %123 : vector<64x1xf32> to vector<64x256xf32>
    %134 = arith.subf %119, %133 : vector<64x256xf32>
    %cst_38 = arith.constant 9.99999974E-6 : f32
    %135 = vector.broadcast %cst_38 : f32 to vector<64x1xf32>
    %136 = arith.addf %132, %135 : vector<64x1xf32>
    %137 = math.rsqrt %136 : vector<64x1xf32>
    %138 = vector.broadcast %137 : vector<64x1xf32> to vector<64x256xf32>
    %139 = arith.mulf %134, %138 : vector<64x256xf32>
    %140 = arith.mulf %139, %47 : vector<64x256xf32>
    %141 = arith.addf %45, %140 : vector<64x256xf32>
    %cst_39 = arith.constant 5.000000e-01 : f32
    %142 = vector.broadcast %cst_39 : f32 to vector<64x256xf32>
    %143 = arith.mulf %142, %141 : vector<64x256xf32>
    %144 = math.tanh %143 : vector<64x256xf32>
    %cst_40 = arith.constant 5.000000e-01 : f32
    %145 = vector.broadcast %cst_40 : f32 to vector<64x256xf32>
    %146 = arith.mulf %145, %144 : vector<64x256xf32>
    %cst_41 = arith.constant 5.000000e-01 : f32
    %147 = vector.broadcast %cst_41 : f32 to vector<64x256xf32>
    %148 = arith.addf %146, %147 : vector<64x256xf32>
    %149 = arith.mulf %148, %119 : vector<64x256xf32>
    %150 = arith.addf %116, %149 : vector<64x256xf32>
    %c3_i32 = arith.constant 3 : i32
    %c0_42 = arith.constant 0 : index
    %c0_43 = arith.constant 0 : index
    %151 = vector.load %arg2[%c0_42, %c0_43] : memref<64x256xf32, #tpu.memory_space<vmem>>, vector<64x256xf32>
    %152 = vector.broadcast %4 : vector<1x256xf32> to vector<64x256xf32>
    %153 = arith.mulf %152, %150 : vector<64x256xf32>
    %154 = arith.addf %151, %153 : vector<64x256xf32>
    %c0_44 = arith.constant 0 : index
    %c0_45 = arith.constant 0 : index
    %155 = vector.load %arg4[%c0_44, %c0_45] : memref<64x256xf32, #tpu.memory_space<vmem>>, vector<64x256xf32>
    tpu.vector_store %arg4[%c0_44, %c0_45], %154 {strides = array<i32>} : memref<64x256xf32, #tpu.memory_space<vmem>>, vector<64x256xf32>,
    return
  }
  func.func @transform_0(%arg0: i32) -> (i32, i32) {
    %c0_i32 = arith.constant 0 : i32
    %c0_i32_0 = arith.constant 0 : i32
    %c0_i32_1 = arith.constant 0 : i32
    return %c0_i32, %c0_i32_0 : i32, i32
  }
  func.func @transform_1(%arg0: i32) -> (i32, i32) {
    %c0_i32 = arith.constant 0 : i32
    %c0_i32_0 = arith.constant 0 : i32
    return %arg0, %c0_i32 : i32, i32
  }
  func.func @transform_2(%arg0: i32) -> (i32, i32, i32) {
    %c0_i32 = arith.constant 0 : i32
    %c0_i32_0 = arith.constant 0 : i32
    %c0_i32_1 = arith.constant 0 : i32
    return %c0_i32, %arg0, %c0_i32_0 : i32, i32, i32
  }
  func.func @transform_3(%arg0: i32) -> (i32, i32) {
    %c0_i32 = arith.constant 0 : i32
    %c0_i32_0 = arith.constant 0 : i32
    return %arg0, %c0_i32 : i32, i32
  }
}

</mosaic_0001>

<llo_original>
// kernel: tpu_custom_call.1
$region0: #{tpu_custom_call.1}
  #allocation0 [shape = 'u32[]', space=smem, size = 0x4, offset = 0x4, fixed_abs, tag = 'smem constant byte address 0x4 - core index']
  #allocation1 [shape = 'u32[144,128]{1,0:T(1,128)}', space=vmem, size = 0x12000, scoped, tag = 'internal scratch']
  #allocation9 [shape = 's32[]', space=sflag, size = 0x4, offset = 0, fixed_abs, tag = 'sflag constant byte address 0x0 - dummy sync flag']
  %s0 = inlined_call_operand.hbm [shape: f32[9,256], index: 0, kind: input, shape index: {}]
  %s1 = inlined_call_operand.hbm [shape: f32[512,256], index: 1, kind: input, shape index: {}]
  %s2 = inlined_call_operand.hbm [shape: f32[3,512,256], index: 2, kind: input, shape index: {}]
  %s3 = inlined_call_operand.hbm [shape: f32[512,256], index: 3, kind: output, shape index: {}]
  %s4 = sld [smem:[#allocation0]]
  $region57: #{tpu_custom_call.1} parent=0
    _
  %s6 = ssub.s32 1, %s4
  %s7 = scalar_select 0, %s6, %s4
  $region1: #{tpu_custom_call.1} parent=0
    #allocation2 [shape = 'u8[16384]{0}', space=vmem, size = 0x4000, scoped, tag = 'input window, operand 0, single buffered']
    #allocation3 [shape = 's32[2]{0}', space=sflag, size = 0x8, scoped, tag = 'scoped memory for tpu_custom_call.1']
    #allocation4 [shape = 's32[2]{0}', space=sflag, size = 0x8, scoped, tag = 'scoped memory for tpu_custom_call.1']
    #allocation5 [shape = 'u8[131072]{0}', space=vmem, size = 0x20000, scoped, tag = 'input window, operand 1']
    #allocation6 [shape = 's32[2]{0}', space=sflag, size = 0x8, scoped, tag = 'scoped memory for tpu_custom_call.1']
    #allocation7 [shape = 'u8[393216]{0}', space=vmem, size = 0x60000, scoped, tag = 'input window, operand 2']
    #allocation8 [shape = 'u8[131072]{0}', space=vmem, size = 0x20000, scoped, tag = 'output window, operand 0']
    %8 = vsyncpa [#allocation3], 0
    %9 = vsyncpa [#allocation6], 0
    %s10 = scalar_lea.sflag [#allocation6], 1
    %11 = vsyncpa %s10, 0
    %12 = vsyncpa [#allocation4], 0
    %s13 = scalar_lea.sflag [#allocation4], 1
    %14 = vsyncpa %s13, 0
    loop: start=0, step=1, limit=10
    $region2: #{tpu_custom_call.1} parent=1 // loop_pre_header
      _
    $region3: #{tpu_custom_call.1} parent=1 // loop_header
      %s16 = sphi 0, %s20
      %p17 = scmp.ge.s32.totalorder %s16, 10
      %s24 = sphi 0, %s24
      %s26 = sphi 0, %s24
      %s27 = sphi 0, %s26
      %s41 = sphi 0, %s27
      %s47 = sphi 0, %s49
      %s50 = sphi 0, %s47
      %s51 = sphi 0, %s50
      %s67 = sphi 0, %s51
      %s73 = sphi 0, %s75
      %s76 = sphi 0, %s73
      %s77 = sphi 0, %s76
      %s93 = sphi 0, %s77
      %s99 = sphi 0, %s101
      %s102 = sphi 0, %s99
      %s103 = sphi 0, %s102
      %s119 = sphi 0, %s103
    $region4: #{tpu_custom_call.1} parent=1 // loop_header_branch
      %19 = sbr.rel (%p17) target = $region8
    $region5: #{tpu_custom_call.1} parent=1 // loop_body
      %s21 = ssub.s32 %s16, 1
      %s22 = ssub.s32 %s16, 2
      %s23 = sadd.s32 %s16, 1
      %s25 = sadd.s32 %s24, 1
      %p28 = scmp.eq.s32.totalorder %s16, 7
      %p29 = scmp.ne.s32.totalorder %s24, %s26
      %p30 = scmp.eq.s32.totalorder %s16, 0
      %p31 = por %p29, %p30
      %p32 = scmp.ne.s32.totalorder %s24, %s26
      %p33 = scmp.eq.s32.totalorder %s21, 7
      %p34 = por %p32, %p33
      %p35 = scmp.ne.s32.totalorder %s26, %s27
      %p36 = scmp.eq.s32.totalorder %s21, 0
      %p37 = por %p35, %p36
      %p38 = scmp.ne.s32.totalorder %s26, %s27
      %p39 = scmp.eq.s32.totalorder %s22, 7
      %p40 = por %p38, %p39
      %p42 = scmp.ne.s32.totalorder %s27, %s41
      %p43 = scmp.eq.s32.totalorder %s22, 0
      %p44 = por %p42, %p43
      %s45 = ssub.s32 %s16, %s23
      %p46 = scmp.eq.s32.totalorder %s45, 0
      %s48 = sadd.s32 %s47, 1
      %s49 = scalar_select %p46, %s47, %s48
      %p52 = pneg %p46
      %p53 = scmp.eq.s32.totalorder %s16, 7
      %p54 = por %p52, %p53
      %p55 = scmp.ne.s32.totalorder %s47, %s50
      %p56 = scmp.eq.s32.totalorder %s16, 0
      %p57 = por %p55, %p56
      %p58 = scmp.ne.s32.totalorder %s47, %s50
      %p59 = scmp.eq.s32.totalorder %s21, 7
      %p60 = por %p58, %p59
      %p61 = scmp.ne.s32.totalorder %s50, %s51
      %p62 = scmp.eq.s32.totalorder %s21, 0
      %p63 = por %p61, %p62
      %p64 = scmp.ne.s32.totalorder %s50, %s51
      %p65 = scmp.eq.s32.totalorder %s22, 7
      %p66 = por %p64, %p65
      %p68 = scmp.ne.s32.totalorder %s51, %s67
      %p69 = scmp.eq.s32.totalorder %s22, 0
      %p70 = por %p68, %p69
      %s71 = ssub.s32 %s16, %s23
      %p72 = scmp.eq.s32.totalorder %s71, 0
      %s74 = sadd.s32 %s73, 1
      %s75 = scalar_select %p72, %s73, %s74
      %p78 = pneg %p72
      %p79 = scmp.eq.s32.totalorder %s16, 7
      %p80 = por %p78, %p79
      %p81 = scmp.ne.s32.totalorder %s73, %s76
      %p82 = scmp.eq.s32.totalorder %s16, 0
      %p83 = por %p81, %p82
      %p84 = scmp.ne.s32.totalorder %s73, %s76
      %p85 = scmp.eq.s32.totalorder %s21, 7
      %p86 = por %p84, %p85
      %p87 = scmp.ne.s32.totalorder %s76, %s77
      %p88 = scmp.eq.s32.totalorder %s21, 0
      %p89 = por %p87, %p88
      %p90 = scmp.ne.s32.totalorder %s76, %s77
      %p91 = scmp.eq.s32.totalorder %s22, 7
      %p92 = por %p90, %p91
      %p94 = scmp.ne.s32.totalorder %s77, %s93
      %p95 = scmp.eq.s32.totalorder %s22, 0
      %p96 = por %p94, %p95
      %s97 = ssub.s32 %s16, %s23
      %p98 = scmp.eq.s32.totalorder %s97, 0
      %s100 = sadd.s32 %s99, 1
      %s101 = scalar_select %p98, %s99, %s100
      %p104 = pneg %p98
      %p105 = scmp.eq.s32.totalorder %s16, 7
      %p106 = por %p104, %p105
      %p107 = scmp.ne.s32.totalorder %s99, %s102
      %p108 = scmp.eq.s32.totalorder %s16, 0
      %p109 = por %p107, %p108
      %p110 = scmp.ne.s32.totalorder %s99, %s102
      %p111 = scmp.eq.s32.totalorder %s21, 7
      %p112 = por %p110, %p111
      %p113 = scmp.ne.s32.totalorder %s102, %s103
      %p114 = scmp.eq.s32.totalorder %s21, 0
      %p115 = por %p113, %p114
      %p116 = scmp.ne.s32.totalorder %s102, %s103
      %p117 = scmp.eq.s32.totalorder %s22, 7
      %p118 = por %p116, %p117
      %p120 = scmp.ne.s32.totalorder %s103, %s119
      %p121 = scmp.eq.s32.totalorder %s22, 0
      %p122 = por %p120, %p121
      %p123 = scmp.le.s32.totalorder 1, %s16
      %p124 = scmp.lt.s32.totalorder %s16, 9
      %p125 = pnand %p123, %p124
      %p126 = pneg %p125
      // Predicated region
      $region9: #{tpu_custom_call.1} parent=5 // pred_check
        _
      $region10: #{tpu_custom_call.1} parent=5 // pred_check_branch
        %128 = sbr.rel (%p125) target = $region12
      $region11: #{tpu_custom_call.1} parent=5 // pred_region
        %s129 = ssub.s32 %s16, 1
        // Predicated region
        $region13: #{tpu_custom_call.1} parent=11 // pred_check
          %p130 = pneg %p37
        $region14: #{tpu_custom_call.1} parent=11 // pred_check_branch
          %132 = sbr.rel (%p130) target = $region16
        $region15: #{tpu_custom_call.1} parent=11 // pred_region
          %s134 = ssub.s32 512, 512
          %135 = vsyncadd [#allocation3], %s134
          %s136 = sshll.u32 [#allocation2], 4
          %s137 = int_to_ptr.vmem [resolvable:$true] %s136
          %142 = dma.hbm_to_vmem [thread:$0]  %s0, 512, %s137, [#allocation3], 256, 256, 16
        $region16: #{tpu_custom_call.1} parent=11 // pred_fallthru
          _
      $region12: #{tpu_custom_call.1} parent=5 // pred_fallthru
        _
      %p143 = scmp.lt.s32.totalorder %s16, 8
      // Predicated region
      $region17: #{tpu_custom_call.1} parent=5 // pred_check
        %p144 = pneg %p143
      $region18: #{tpu_custom_call.1} parent=5 // pred_check_branch
        %146 = sbr.rel (%p144) target = $region20
      $region19: #{tpu_custom_call.1} parent=5 // pred_region
        // Predicated region
        $region21: #{tpu_custom_call.1} parent=19 // pred_check
          %p147 = pneg %p57
        $region22: #{tpu_custom_call.1} parent=19 // pred_check_branch
          %149 = sbr.rel (%p147) target = $region24
        $region23: #{tpu_custom_call.1} parent=19 // pred_region
          %s150 = sand.u32 %s16, 1
          %s151 = scalar_lea.sflag [#allocation6], %s150
          %s152 = sand.u32 %s47, 1
          %s153 = smul.addr %s152, 128
          %s154 = scalar_lea.vmem [#allocation5], %s153
          %s155 = smul.u32 8, %s16
          %s157 = ssub.s32 2048, 2048
          %158 = vsyncadd %s151, %s157
          %s159 = smul.addr %s155, 2
          %s160 = smul.addr %s159, 128
          %s161 = scalar_lea.hbm %s1, %s160
          %s162 = sshll.u32 %s154, 4
          %s163 = int_to_ptr.vmem [resolvable:$true] %s162
          %168 = dma.hbm_to_vmem [thread:$0]  %s161, 2048, %s163, %s151, 256, 256, 16
        $region24: #{tpu_custom_call.1} parent=19 // pred_fallthru
          _
        // Predicated region
        $region25: #{tpu_custom_call.1} parent=19 // pred_check
          %p169 = pneg %p83
        $region26: #{tpu_custom_call.1} parent=19 // pred_check_branch
          %171 = sbr.rel (%p169) target = $region28
        $region27: #{tpu_custom_call.1} parent=19 // pred_region
          #allocation10 [shape = 'u32[6]{0}', space=smem, size = 0x18, scoped, tag = 'DMA stride descriptor']
          %s172 = sand.u32 %s16, 1
          %s173 = scalar_lea.sflag [#allocation6], %s172
          %s174 = sand.u32 %s73, 1
          %s175 = smul.addr %s174, 384
          %s176 = scalar_lea.vmem [#allocation7], %s175
          %s177 = smul.u32 8, %s16
          %s179 = ssub.s32 6144, 6144
          %180 = vsyncadd %s173, %s179
          %s181 = smul.addr %s177, 2
          %s182 = smul.addr %s181, 128
          %s183 = scalar_lea.hbm %s2, %s182
          %s185 = sshll.u32 1, 14
          %s186 = sxor.u32 4294967295, %s185
          %s188 = sld [smem:[#allocation0]]
          %s189 = sadd.s32 2, %s188
          %s191 = sshll.u32 7, 26
          %s192 = sxor.u32 4294967295, %s191
          %s193 = sand.u32 0, %s192
          %s194 = sshll.u32 %s189, 26
          %s195 = sor.u32 %s193, %s194
          %s196 = sshll.u32 %s176, 4
          %s197 = int_to_ptr.vmem [resolvable:$true] %s196
          %203 = sst [smem:[#allocation10]] 16384
          %s204 = scalar_lea.smem [#allocation10], 1
          %205 = sst [smem:[%s204]] 2048
          %s206 = scalar_lea.smem [#allocation10], 2
          %207 = sst [smem:[%s206]] 8
          %s208 = scalar_lea.smem [#allocation10], 3
          %209 = sst [smem:[%s208]] 256
          %s210 = scalar_lea.smem [#allocation10], 4
          %211 = sst [smem:[%s210]] 256
          %s212 = scalar_lea.smem [#allocation10], 5
          %213 = sst [smem:[%s212]] 16
          %215 = dma.general %s183, 6144, %s197, %s173, [#allocation9], [#allocation10], %s195, 0
        $region28: #{tpu_custom_call.1} parent=19 // pred_fallthru
          _
      $region20: #{tpu_custom_call.1} parent=5 // pred_fallthru
        _
      %p216 = scmp.le.s32.totalorder 1, %s16
      %p217 = scmp.lt.s32.totalorder %s16, 9
      %p218 = pnand %p216, %p217
      %p219 = pneg %p218
      // Predicated region
      $region29: #{tpu_custom_call.1} parent=5 // pred_check
        _
      $region30: #{tpu_custom_call.1} parent=5 // pred_check_branch
        %221 = sbr.rel (%p218) target = $region32
      $region31: #{tpu_custom_call.1} parent=5 // pred_region
        %s222 = ssub.s32 %s16, 1
        // Predicated region
        $region33: #{tpu_custom_call.1} parent=31 // pred_check
          %p223 = pneg %p37
        $region34: #{tpu_custom_call.1} parent=31 // pred_check_branch
          %225 = sbr.rel (%p223) target = $region36
        $region35: #{tpu_custom_call.1} parent=31 // pred_region
          %226 = dma.done [#allocation3], 512
        $region36: #{tpu_custom_call.1} parent=31 // pred_fallthru
          _
        %s227 = sand.u32 %s21, 1
        %s228 = scalar_lea.sflag [#allocation6], %s227
        %s229 = sand.u32 %s50, 1
        %s230 = smul.addr %s229, 128
        %s231 = scalar_lea.vmem [#allocation5], %s230
        // Predicated region
        $region37: #{tpu_custom_call.1} parent=31 // pred_check
          %p232 = pneg %p63
        $region38: #{tpu_custom_call.1} parent=31 // pred_check_branch
          %234 = sbr.rel (%p232) target = $region40
        $region39: #{tpu_custom_call.1} parent=31 // pred_region
          %235 = dma.done %s228, 2048
        $region40: #{tpu_custom_call.1} parent=31 // pred_fallthru
          _
        %s236 = sand.u32 %s21, 1
        %s237 = scalar_lea.sflag [#allocation6], %s236
        %s238 = sand.u32 %s76, 1
        %s239 = smul.addr %s238, 384
        %s240 = scalar_lea.vmem [#allocation7], %s239
        // Predicated region
        $region41: #{tpu_custom_call.1} parent=31 // pred_check
          %p241 = pneg %p89
        $region42: #{tpu_custom_call.1} parent=31 // pred_check_branch
          %243 = sbr.rel (%p241) target = $region44
        $region43: #{tpu_custom_call.1} parent=31 // pred_region
          %244 = dma.done %s237, 6144
        $region44: #{tpu_custom_call.1} parent=31 // pred_fallthru
          _
        %p245 = pneg %p37
        %p246 = pneg %p34
        %s247 = sand.u32 %s21, 1
        %s248 = scalar_lea.sflag [#allocation6], %s247
        %s249 = sand.u32 %s50, 1
        %s250 = smul.addr %s249, 128
        %s251 = scalar_lea.vmem [#allocation5], %s250
        %p252 = pneg %p63
        %p253 = pneg %p60
        %s254 = sand.u32 %s21, 1
        %s255 = scalar_lea.sflag [#allocation6], %s254
        %s256 = sand.u32 %s76, 1
        %s257 = smul.addr %s256, 384
        %s258 = scalar_lea.vmem [#allocation7], %s257
        %p259 = pneg %p89
        %p260 = pneg %p86
        %p261 = pneg %p115
        %p262 = pneg %p112
        %s263 = sand.u32 %s102, 1
        %s264 = scalar_lea.sflag [#allocation4], %s263
        %s265 = sand.u32 %s102, 1
        %s266 = smul.addr %s265, 128
        %s267 = scalar_lea.vmem [#allocation8], %s266
        %s268 = smul.u32 8, %s21
        %s269 = smul.u32 8, %s21
        %s270 = smul.u32 8, %s21
        %v271 = vld [vmem:[#allocation2] sm:$0xff]
        %v272 = vld [vmem:[#allocation2 + $0x8] sm:$0xff]
        %v273 = vld [vmem:[#allocation2 + $0x10] sm:$0x1]
        %v274 = vld [vmem:[#allocation2 + $0x18] sm:$0x1]
        %v275 = vld [vmem:[%s231] sm:$0xff]
        %v276 = vld [vmem:[%s231 + $0x8] sm:$0xff]
        %v277 = vld [vmem:[%s231 + $0x10] sm:$0xff]
        %v278 = vld [vmem:[%s231 + $0x18] sm:$0xff]
        %v279 = vld [vmem:[%s231 + $0x20] sm:$0xff]
        %v280 = vld [vmem:[%s231 + $0x28] sm:$0xff]
        %v281 = vld [vmem:[%s231 + $0x30] sm:$0xff]
        %v282 = vld [vmem:[%s231 + $0x38] sm:$0xff]
        %v283 = vld [vmem:[%s231 + $0x40] sm:$0xff]
        %v284 = vld [vmem:[%s231 + $0x48] sm:$0xff]
        %v285 = vld [vmem:[%s231 + $0x50] sm:$0xff]
        %v286 = vld [vmem:[%s231 + $0x58] sm:$0xff]
        %v287 = vld [vmem:[%s231 + $0x60] sm:$0xff]
        %v288 = vld [vmem:[%s231 + $0x68] sm:$0xff]
        %v289 = vld [vmem:[%s231 + $0x70] sm:$0xff]
        %v290 = vld [vmem:[%s231 + $0x78] sm:$0xff]
        %v291 = vadd.f32 %v275, %v276
        %292 = vadd.xlane.f32.xlu0 %v291
        %v293 = vpop.xlane.xlu0 %292
        %v294 = vadd.f32 %v277, %v278
        %295 = vadd.xlane.f32.xlu0 %v294
        %v296 = vpop.xlane.xlu0 %295
        %v297 = vadd.f32 %v279, %v280
        %298 = vadd.xlane.f32.xlu0 %v297
        %v299 = vpop.xlane.xlu0 %298
        %v300 = vadd.f32 %v281, %v282
        %301 = vadd.xlane.f32.xlu0 %v300
        %v302 = vpop.xlane.xlu0 %301
        %v303 = vadd.f32 %v283, %v284
        %304 = vadd.xlane.f32.xlu0 %v303
        %v305 = vpop.xlane.xlu0 %304
        %v306 = vadd.f32 %v285, %v286
        %307 = vadd.xlane.f32.xlu0 %v306
        %v308 = vpop.xlane.xlu0 %307
        %v309 = vadd.f32 %v287, %v288
        %310 = vadd.xlane.f32.xlu0 %v309
        %v311 = vpop.xlane.xlu0 %310
        %v312 = vadd.f32 %v289, %v290
        %313 = vadd.xlane.f32.xlu0 %v312
        %v314 = vpop.xlane.xlu0 %313
        %v315 = vmul.f32 %v293, 0.00390625
        %v316 = vmul.f32 %v296, 0.00390625
        %v317 = vmul.f32 %v299, 0.00390625
        %v318 = vmul.f32 %v302, 0.00390625
        %v319 = vmul.f32 %v305, 0.00390625
        %v320 = vmul.f32 %v308, 0.00390625
        %v321 = vmul.f32 %v311, 0.00390625
        %v322 = vmul.f32 %v314, 0.00390625
        %v323 = vmul.f32 %v275, %v275
        %v324 = vmul.f32 %v276, %v276
        %v325 = vmul.f32 %v277, %v277
        %v326 = vmul.f32 %v278, %v278
        %v327 = vmul.f32 %v279, %v279
        %v328 = vmul.f32 %v280, %v280
        %v329 = vmul.f32 %v281, %v281
        %v330 = vmul.f32 %v282, %v282
        %v331 = vmul.f32 %v283, %v283
        %v332 = vmul.f32 %v284, %v284
        %v333 = vmul.f32 %v285, %v285
        %v334 = vmul.f32 %v286, %v286
        %v335 = vmul.f32 %v287, %v287
        %v336 = vmul.f32 %v288, %v288
        %v337 = vmul.f32 %v289, %v289
        %v338 = vmul.f32 %v290, %v290
        %v339 = vadd.f32 %v323, %v324
        %340 = vadd.xlane.f32.xlu0 %v339
        %v341 = vpop.xlane.xlu0 %340
        %v342 = vadd.f32 %v325, %v326
        %343 = vadd.xlane.f32.xlu0 %v342
        %v344 = vpop.xlane.xlu0 %343
        %v345 = vadd.f32 %v327, %v328
        %346 = vadd.xlane.f32.xlu0 %v345
        %v347 = vpop.xlane.xlu0 %346
        %v348 = vadd.f32 %v329, %v330
        %349 = vadd.xlane.f32.xlu0 %v348
        %v350 = vpop.xlane.xlu0 %349
        %v351 = vadd.f32 %v331, %v332
        %352 = vadd.xlane.f32.xlu0 %v351
        %v353 = vpop.xlane.xlu0 %352
        %v354 = vadd.f32 %v333, %v334
        %355 = vadd.xlane.f32.xlu0 %v354
        %v356 = vpop.xlane.xlu0 %355
        %v357 = vadd.f32 %v335, %v336
        %358 = vadd.xlane.f32.xlu0 %v357
        %v359 = vpop.xlane.xlu0 %358
        %v360 = vadd.f32 %v337, %v338
        %361 = vadd.xlane.f32.xlu0 %v360
        %v362 = vpop.xlane.xlu0 %361
        %v363 = vmul.f32 %v341, 0.00390625
        %v364 = vmul.f32 %v344, 0.00390625
        %v365 = vmul.f32 %v347, 0.00390625
        %v366 = vmul.f32 %v350, 0.00390625
        %v367 = vmul.f32 %v353, 0.00390625
        %v368 = vmul.f32 %v356, 0.00390625
        %v369 = vmul.f32 %v359, 0.00390625
        %v370 = vmul.f32 %v362, 0.00390625
        %v371 = vmul.f32 %v315, %v315
        %v372 = vmul.f32 %v316, %v316
        %v373 = vmul.f32 %v317, %v317
        %v374 = vmul.f32 %v318, %v318
        %v375 = vmul.f32 %v319, %v319
        %v376 = vmul.f32 %v320, %v320
        %v377 = vmul.f32 %v321, %v321
        %v378 = vmul.f32 %v322, %v322
        %v379 = vsub.f32 %v363, %v371
        %v380 = vsub.f32 %v364, %v372
        %v381 = vsub.f32 %v365, %v373
        %v382 = vsub.f32 %v366, %v374
        %v383 = vsub.f32 %v367, %v375
        %v384 = vsub.f32 %v368, %v376
        %v385 = vsub.f32 %v369, %v377
        %v386 = vsub.f32 %v370, %v378
        %v387 = vmax.f32 %v379, 0.0
        %v388 = vmax.f32 %v380, 0.0
        %v389 = vmax.f32 %v381, 0.0
        %v390 = vmax.f32 %v382, 0.0
        %v391 = vmax.f32 %v383, 0.0
        %v392 = vmax.f32 %v384, 0.0
        %v393 = vmax.f32 %v385, 0.0
        %v394 = vmax.f32 %v386, 0.0
        %v395 = vsub.f32 %v275, %v315
        %v396 = vsub.f32 %v276, %v315
        %v397 = vsub.f32 %v277, %v316
        %v398 = vsub.f32 %v278, %v316
        %v399 = vsub.f32 %v279, %v317
        %v400 = vsub.f32 %v280, %v317
        %v401 = vsub.f32 %v281, %v318
        %v402 = vsub.f32 %v282, %v318
        %v403 = vsub.f32 %v283, %v319
        %v404 = vsub.f32 %v284, %v319
        %v405 = vsub.f32 %v285, %v320
        %v406 = vsub.f32 %v286, %v320
        %v407 = vsub.f32 %v287, %v321
        %v408 = vsub.f32 %v288, %v321
        %v409 = vsub.f32 %v289, %v322
        %v410 = vsub.f32 %v290, %v322
        %v411 = vadd.f32 %v387, 1e-05
        %v412 = vadd.f32 %v388, 1e-05
        %v413 = vadd.f32 %v389, 1e-05
        %v414 = vadd.f32 %v390, 1e-05
        %v415 = vadd.f32 %v391, 1e-05
        %v416 = vadd.f32 %v392, 1e-05
        %v417 = vadd.f32 %v393, 1e-05
        %v418 = vadd.f32 %v394, 1e-05
        %v419 = vrsqrt.pop %v411
        %v420 = vrsqrt.pop %v412
        %v421 = vrsqrt.pop %v413
        %v422 = vrsqrt.pop %v414
        %v423 = vrsqrt.pop %v415
        %v424 = vrsqrt.pop %v416
        %v425 = vrsqrt.pop %v417
        %v426 = vrsqrt.pop %v418
        %v427 = vmul.f32 %v395, %v419
        %v428 = vmul.f32 %v396, %v419
        %v429 = vmul.f32 %v397, %v420
        %v430 = vmul.f32 %v398, %v420
        %v431 = vmul.f32 %v399, %v421
        %v432 = vmul.f32 %v400, %v421
        %v433 = vmul.f32 %v401, %v422
        %v434 = vmul.f32 %v402, %v422
        %v435 = vmul.f32 %v403, %v423
        %v436 = vmul.f32 %v404, %v423
        %v437 = vmul.f32 %v405, %v424
        %v438 = vmul.f32 %v406, %v424
        %v439 = vmul.f32 %v407, %v425
        %v440 = vmul.f32 %v408, %v425
        %v441 = vmul.f32 %v409, %v426
        %v442 = vmul.f32 %v410, %v426
        %v443 = vlaneseq
        %v444 = vshrl.u32 %v443, 7
        %v445 = vsub.s32 5, %v444
        %v446 = vrot.slane %v271, %v445
        %v447 = vlaneseq
        %v448 = vshrl.u32 %v447, 7
        %v449 = vsub.s32 5, %v448
        %v450 = vrot.slane %v272, %v449
        %v451 = vmul.f32 %v427, %v446
        %v452 = vmul.f32 %v428, %v450
        %v453 = vmul.f32 %v429, %v446
        %v454 = vmul.f32 %v430, %v450
        %v455 = vmul.f32 %v431, %v446
        %v456 = vmul.f32 %v432, %v450
        %v457 = vmul.f32 %v433, %v446
        %v458 = vmul.f32 %v434, %v450
        %v459 = vmul.f32 %v435, %v446
        %v460 = vmul.f32 %v436, %v450
        %v461 = vmul.f32 %v437, %v446
        %v462 = vmul.f32 %v438, %v450
        %v463 = vmul.f32 %v439, %v446
        %v464 = vmul.f32 %v440, %v450
        %v465 = vmul.f32 %v441, %v446
        %v466 = vmul.f32 %v442, %v450
        %v467 = vlaneseq
        %v468 = vshrl.u32 %v467, 7
        %v469 = vsub.s32 6, %v468
        %v470 = vrot.slane %v271, %v469
        %v471 = vlaneseq
        %v472 = vshrl.u32 %v471, 7
        %v473 = vsub.s32 6, %v472
        %v474 = vrot.slane %v272, %v473
        %v475 = vadd.f32 %v451, %v470
        %v476 = vadd.f32 %v452, %v474
        %v477 = vadd.f32 %v453, %v470
        %v478 = vadd.f32 %v454, %v474
        %v479 = vadd.f32 %v455, %v470
        %v480 = vadd.f32 %v456, %v474
        %v481 = vadd.f32 %v457, %v470
        %v482 = vadd.f32 %v458, %v474
        %v483 = vadd.f32 %v459, %v470
        %v484 = vadd.f32 %v460, %v474
        %v485 = vadd.f32 %v461, %v470
        %v486 = vadd.f32 %v462, %v474
        %v487 = vadd.f32 %v463, %v470
        %v488 = vadd.f32 %v464, %v474
        %v489 = vadd.f32 %v465, %v470
        %v490 = vadd.f32 %v466, %v474
        %v491 = vlaneseq
        %v492 = vshrl.u32 %v491, 7
        %v493 = vsub.s32 0, %v492
        %v494 = vrot.slane %v271, %v493
        %v495 = vlaneseq
        %v496 = vshrl.u32 %v495, 7
        %v497 = vsub.s32 0, %v496
        %v498 = vrot.slane %v272, %v497
        %v499 = vmul.f32 %v475, %v494
        %v500 = vmul.f32 %v476, %v498
        %v501 = vmul.f32 %v477, %v494
        %v502 = vmul.f32 %v478, %v498
        %v503 = vmul.f32 %v479, %v494
        %v504 = vmul.f32 %v480, %v498
        %v505 = vmul.f32 %v481, %v494
        %v506 = vmul.f32 %v482, %v498
        %v507 = vmul.f32 %v483, %v494
        %v508 = vmul.f32 %v484, %v498
        %v509 = vmul.f32 %v485, %v494
        %v510 = vmul.f32 %v486, %v498
        %v511 = vmul.f32 %v487, %v494
        %v512 = vmul.f32 %v488, %v498
        %v513 = vmul.f32 %v489, %v494
        %v514 = vmul.f32 %v490, %v498
        %v515 = vlaneseq
        %v516 = vshrl.u32 %v515, 7
        %v517 = vsub.s32 4, %v516
        %v518 = vrot.slane %v271, %v517
        %v519 = vlaneseq
        %v520 = vshrl.u32 %v519, 7
        %v521 = vsub.s32 4, %v520
        %v522 = vrot.slane %v272, %v521
        %v523 = vadd.f32 %v499, %v518
        %v524 = vadd.f32 %v500, %v522
        %v525 = vadd.f32 %v501, %v518
        %v526 = vadd.f32 %v502, %v522
        %v527 = vadd.f32 %v503, %v518
        %v528 = vadd.f32 %v504, %v522
        %v529 = vadd.f32 %v505, %v518
        %v530 = vadd.f32 %v506, %v522
        %v531 = vadd.f32 %v507, %v518
        %v532 = vadd.f32 %v508, %v522
        %v533 = vadd.f32 %v509, %v518
        %v534 = vadd.f32 %v510, %v522
        %v535 = vadd.f32 %v511, %v518
        %v536 = vadd.f32 %v512, %v522
        %v537 = vadd.f32 %v513, %v518
        %v538 = vadd.f32 %v514, %v522
        %v539 = vlaneseq
        %v540 = vshrl.u32 %v539, 7
        %v541 = vsub.s32 2, %v540
        %v542 = vrot.slane %v271, %v541
        %v543 = vlaneseq
        %v544 = vshrl.u32 %v543, 7
        %v545 = vsub.s32 2, %v544
        %v546 = vrot.slane %v272, %v545
        %v547 = vmul.f32 %v475, %v542
        %v548 = vmul.f32 %v476, %v546
        %v549 = vmul.f32 %v477, %v542
        %v550 = vmul.f32 %v478, %v546
        %v551 = vmul.f32 %v479, %v542
        %v552 = vmul.f32 %v480, %v546
        %v553 = vmul.f32 %v481, %v542
        %v554 = vmul.f32 %v482, %v546
        %v555 = vmul.f32 %v483, %v542
        %v556 = vmul.f32 %v484, %v546
        %v557 = vmul.f32 %v485, %v542
        %v558 = vmul.f32 %v486, %v546
        %v559 = vmul.f32 %v487, %v542
        %v560 = vmul.f32 %v488, %v546
        %v561 = vmul.f32 %v489, %v542
        %v562 = vmul.f32 %v490, %v546
        %v563 = vlaneseq
        %v564 = vshrl.u32 %v563, 7
        %v565 = vsub.s32 1, %v564
        %v566 = vrot.slane %v271, %v565
        %v567 = vlaneseq
        %v568 = vshrl.u32 %v567, 7
        %v569 = vsub.s32 1, %v568
        %v570 = vrot.slane %v272, %v569
        %v571 = vadd.f32 %v566, %v547
        %v572 = vadd.f32 %v570, %v548
        %v573 = vadd.f32 %v566, %v549
        %v574 = vadd.f32 %v570, %v550
        %v575 = vadd.f32 %v566, %v551
        %v576 = vadd.f32 %v570, %v552
        %v577 = vadd.f32 %v566, %v553
        %v578 = vadd.f32 %v570, %v554
        %v579 = vadd.f32 %v566, %v555
        %v580 = vadd.f32 %v570, %v556
        %v581 = vadd.f32 %v566, %v557
        %v582 = vadd.f32 %v570, %v558
        %v583 = vadd.f32 %v566, %v559
        %v584 = vadd.f32 %v570, %v560
        %v585 = vadd.f32 %v566, %v561
        %v586 = vadd.f32 %v570, %v562
        %v587 = vlaneseq
        %v588 = vshrl.u32 %v587, 7
        %v589 = vsub.s32 0, %v588
        %v590 = vrot.slane %v273, %v589
        %v591 = vlaneseq
        %v592 = vshrl.u32 %v591, 7
        %v593 = vsub.s32 0, %v592
        %v594 = vrot.slane %v274, %v593
        %v595 = vmul.f32 %v571, %v590
        %v596 = vmul.f32 %v572, %v594
        %v597 = vmul.f32 %v573, %v590
        %v598 = vmul.f32 %v574, %v594
        %v599 = vmul.f32 %v575, %v590
        %v600 = vmul.f32 %v576, %v594
        %v601 = vmul.f32 %v577, %v590
        %v602 = vmul.f32 %v578, %v594
        %v603 = vmul.f32 %v579, %v590
        %v604 = vmul.f32 %v580, %v594
        %v605 = vmul.f32 %v581, %v590
        %v606 = vmul.f32 %v582, %v594
        %v607 = vmul.f32 %v583, %v590
        %v608 = vmul.f32 %v584, %v594
        %v609 = vmul.f32 %v585, %v590
        %v610 = vmul.f32 %v586, %v594
        %v611 = vadd.f32 %v523, %v595
        %v612 = vadd.f32 %v524, %v596
        %v613 = vadd.f32 %v525, %v597
        %v614 = vadd.f32 %v526, %v598
        %v615 = vadd.f32 %v527, %v599
        %v616 = vadd.f32 %v528, %v600
        %v617 = vadd.f32 %v529, %v601
        %v618 = vadd.f32 %v530, %v602
        %v619 = vadd.f32 %v531, %v603
        %v620 = vadd.f32 %v532, %v604
        %v621 = vadd.f32 %v533, %v605
        %v622 = vadd.f32 %v534, %v606
        %v623 = vadd.f32 %v535, %v607
        %v624 = vadd.f32 %v536, %v608
        %v625 = vadd.f32 %v537, %v609
        %v626 = vadd.f32 %v538, %v610
        %v627 = vlaneseq
        %v628 = vshrl.u32 %v627, 7
        %v629 = vsub.s32 7, %v628
        %v630 = vrot.slane %v271, %v629
        %v631 = vlaneseq
        %v632 = vshrl.u32 %v631, 7
        %v633 = vsub.s32 7, %v632
        %v634 = vrot.slane %v272, %v633
        %v635 = vmul.f32 %v571, %v630
        %v636 = vmul.f32 %v572, %v634
        %v637 = vmul.f32 %v573, %v630
        %v638 = vmul.f32 %v574, %v634
        %v639 = vmul.f32 %v575, %v630
        %v640 = vmul.f32 %v576, %v634
        %v641 = vmul.f32 %v577, %v630
        %v642 = vmul.f32 %v578, %v634
        %v643 = vmul.f32 %v579, %v630
        %v644 = vmul.f32 %v580, %v634
        %v645 = vmul.f32 %v581, %v630
        %v646 = vmul.f32 %v582, %v634
        %v647 = vmul.f32 %v583, %v630
        %v648 = vmul.f32 %v584, %v634
        %v649 = vmul.f32 %v585, %v630
        %v650 = vmul.f32 %v586, %v634
        %v651 = vld [vmem:[%s240] sm:$0xff]
        %v652 = vld [vmem:[%s240 + $0x8] sm:$0xff]
        %v653 = vld [vmem:[%s240 + $0x10] sm:$0xff]
        %v654 = vld [vmem:[%s240 + $0x18] sm:$0xff]
        %v655 = vld [vmem:[%s240 + $0x20] sm:$0xff]
        %v656 = vld [vmem:[%s240 + $0x28] sm:$0xff]
        %v657 = vld [vmem:[%s240 + $0x30] sm:$0xff]
        %v658 = vld [vmem:[%s240 + $0x38] sm:$0xff]
        %v659 = vld [vmem:[%s240 + $0x40] sm:$0xff]
        %v660 = vld [vmem:[%s240 + $0x48] sm:$0xff]
        %v661 = vld [vmem:[%s240 + $0x50] sm:$0xff]
        %v662 = vld [vmem:[%s240 + $0x58] sm:$0xff]
        %v663 = vld [vmem:[%s240 + $0x60] sm:$0xff]
        %v664 = vld [vmem:[%s240 + $0x68] sm:$0xff]
        %v665 = vld [vmem:[%s240 + $0x70] sm:$0xff]
        %v666 = vld [vmem:[%s240 + $0x78] sm:$0xff]
        %v667 = vadd.f32 %v651, %v652
        %668 = vadd.xlane.f32.xlu0 %v667
        %v669 = vpop.xlane.xlu0 %668
        %v670 = vadd.f32 %v653, %v654
        %671 = vadd.xlane.f32.xlu0 %v670
        %v672 = vpop.xlane.xlu0 %671
        %v673 = vadd.f32 %v655, %v656
        %674 = vadd.xlane.f32.xlu0 %v673
        %v675 = vpop.xlane.xlu0 %674
        %v676 = vadd.f32 %v657, %v658
        %677 = vadd.xlane.f32.xlu0 %v676
        %v678 = vpop.xlane.xlu0 %677
        %v679 = vadd.f32 %v659, %v660
        %680 = vadd.xlane.f32.xlu0 %v679
        %v681 = vpop.xlane.xlu0 %680
        %v682 = vadd.f32 %v661, %v662
        %683 = vadd.xlane.f32.xlu0 %v682
        %v684 = vpop.xlane.xlu0 %683
        %v685 = vadd.f32 %v663, %v664
        %686 = vadd.xlane.f32.xlu0 %v685
        %v687 = vpop.xlane.xlu0 %686
        %v688 = vadd.f32 %v665, %v666
        %689 = vadd.xlane.f32.xlu0 %v688
        %v690 = vpop.xlane.xlu0 %689
        %v691 = vmul.f32 %v669, 0.00390625
        %v692 = vmul.f32 %v672, 0.00390625
        %v693 = vmul.f32 %v675, 0.00390625
        %v694 = vmul.f32 %v678, 0.00390625
        %v695 = vmul.f32 %v681, 0.00390625
        %v696 = vmul.f32 %v684, 0.00390625
        %v697 = vmul.f32 %v687, 0.00390625
        %v698 = vmul.f32 %v690, 0.00390625
        %v699 = vmul.f32 %v651, %v651
        %v700 = vmul.f32 %v652, %v652
        %v701 = vmul.f32 %v653, %v653
        %v702 = vmul.f32 %v654, %v654
        %v703 = vmul.f32 %v655, %v655
        %v704 = vmul.f32 %v656, %v656
        %v705 = vmul.f32 %v657, %v657
        %v706 = vmul.f32 %v658, %v658
        %v707 = vmul.f32 %v659, %v659
        %v708 = vmul.f32 %v660, %v660
        %v709 = vmul.f32 %v661, %v661
        %v710 = vmul.f32 %v662, %v662
        %v711 = vmul.f32 %v663, %v663
        %v712 = vmul.f32 %v664, %v664
        %v713 = vmul.f32 %v665, %v665
        %v714 = vmul.f32 %v666, %v666
        %v715 = vadd.f32 %v699, %v700
        %716 = vadd.xlane.f32.xlu0 %v715
        %v717 = vpop.xlane.xlu0 %716
        %v718 = vadd.f32 %v701, %v702
        %719 = vadd.xlane.f32.xlu0 %v718
        %v720 = vpop.xlane.xlu0 %719
        %v721 = vadd.f32 %v703, %v704
        %722 = vadd.xlane.f32.xlu0 %v721
        %v723 = vpop.xlane.xlu0 %722
        %v724 = vadd.f32 %v705, %v706
        %725 = vadd.xlane.f32.xlu0 %v724
        %v726 = vpop.xlane.xlu0 %725
        %v727 = vadd.f32 %v707, %v708
        %728 = vadd.xlane.f32.xlu0 %v727
        %v729 = vpop.xlane.xlu0 %728
        %v730 = vadd.f32 %v709, %v710
        %731 = vadd.xlane.f32.xlu0 %v730
        %v732 = vpop.xlane.xlu0 %731
        %v733 = vadd.f32 %v711, %v712
        %734 = vadd.xlane.f32.xlu0 %v733
        %v735 = vpop.xlane.xlu0 %734
        %v736 = vadd.f32 %v713, %v714
        %737 = vadd.xlane.f32.xlu0 %v736
        %v738 = vpop.xlane.xlu0 %737
        %v739 = vmul.f32 %v717, 0.00390625
        %v740 = vmul.f32 %v720, 0.00390625
        %v741 = vmul.f32 %v723, 0.00390625
        %v742 = vmul.f32 %v726, 0.00390625
        %v743 = vmul.f32 %v729, 0.00390625
        %v744 = vmul.f32 %v732, 0.00390625
        %v745 = vmul.f32 %v735, 0.00390625
        %v746 = vmul.f32 %v738, 0.00390625
        %v747 = vmul.f32 %v691, %v691
        %v748 = vmul.f32 %v692, %v692
        %v749 = vmul.f32 %v693, %v693
        %v750 = vmul.f32 %v694, %v694
        %v751 = vmul.f32 %v695, %v695
        %v752 = vmul.f32 %v696, %v696
        %v753 = vmul.f32 %v697, %v697
        %v754 = vmul.f32 %v698, %v698
        %v755 = vsub.f32 %v739, %v747
        %v756 = vsub.f32 %v740, %v748
        %v757 = vsub.f32 %v741, %v749
        %v758 = vsub.f32 %v742, %v750
        %v759 = vsub.f32 %v743, %v751
        %v760 = vsub.f32 %v744, %v752
        %v761 = vsub.f32 %v745, %v753
        %v762 = vsub.f32 %v746, %v754
        %v763 = vmax.f32 %v755, 0.0
        %v764 = vmax.f32 %v756, 0.0
        %v765 = vmax.f32 %v757, 0.0
        %v766 = vmax.f32 %v758, 0.0
        %v767 = vmax.f32 %v759, 0.0
        %v768 = vmax.f32 %v760, 0.0
        %v769 = vmax.f32 %v761, 0.0
        %v770 = vmax.f32 %v762, 0.0
        %v771 = vsub.f32 %v651, %v691
        %v772 = vsub.f32 %v652, %v691
        %v773 = vsub.f32 %v653, %v692
        %v774 = vsub.f32 %v654, %v692
        %v775 = vsub.f32 %v655, %v693
        %v776 = vsub.f32 %v656, %v693
        %v777 = vsub.f32 %v657, %v694
        %v778 = vsub.f32 %v658, %v694
        %v779 = vsub.f32 %v659, %v695
        %v780 = vsub.f32 %v660, %v695
        %v781 = vsub.f32 %v661, %v696
        %v782 = vsub.f32 %v662, %v696
        %v783 = vsub.f32 %v663, %v697
        %v784 = vsub.f32 %v664, %v697
        %v785 = vsub.f32 %v665, %v698
        %v786 = vsub.f32 %v666, %v698
        %v787 = vadd.f32 %v763, 1e-05
        %v788 = vadd.f32 %v764, 1e-05
        %v789 = vadd.f32 %v765, 1e-05
        %v790 = vadd.f32 %v766, 1e-05
        %v791 = vadd.f32 %v767, 1e-05
        %v792 = vadd.f32 %v768, 1e-05
        %v793 = vadd.f32 %v769, 1e-05
        %v794 = vadd.f32 %v770, 1e-05
        %v795 = vrsqrt.pop %v787
        %v796 = vrsqrt.pop %v788
        %v797 = vrsqrt.pop %v789
        %v798 = vrsqrt.pop %v790
        %v799 = vrsqrt.pop %v791
        %v800 = vrsqrt.pop %v792
        %v801 = vrsqrt.pop %v793
        %v802 = vrsqrt.pop %v794
        %v803 = vmul.f32 %v771, %v795
        %v804 = vmul.f32 %v772, %v795
        %v805 = vmul.f32 %v773, %v796
        %v806 = vmul.f32 %v774, %v796
        %v807 = vmul.f32 %v775, %v797
        %v808 = vmul.f32 %v776, %v797
        %v809 = vmul.f32 %v777, %v798
        %v810 = vmul.f32 %v778, %v798
        %v811 = vmul.f32 %v779, %v799
        %v812 = vmul.f32 %v780, %v799
        %v813 = vmul.f32 %v781, %v800
        %v814 = vmul.f32 %v782, %v800
        %v815 = vmul.f32 %v783, %v801
        %v816 = vmul.f32 %v784, %v801
        %v817 = vmul.f32 %v785, %v802
        %v818 = vmul.f32 %v786, %v802
        %v819 = vmul.f32 %v803, %v635
        %v820 = vmul.f32 %v804, %v636
        %v821 = vmul.f32 %v805, %v637
        %v822 = vmul.f32 %v806, %v638
        %v823 = vmul.f32 %v807, %v639
        %v824 = vmul.f32 %v808, %v640
        %v825 = vmul.f32 %v809, %v641
        %v826 = vmul.f32 %v810, %v642
        %v827 = vmul.f32 %v811, %v643
        %v828 = vmul.f32 %v812, %v644
        %v829 = vmul.f32 %v813, %v645
        %v830 = vmul.f32 %v814, %v646
        %v831 = vmul.f32 %v815, %v647
        %v832 = vmul.f32 %v816, %v648
        %v833 = vmul.f32 %v817, %v649
        %v834 = vmul.f32 %v818, %v650
        %v835 = vadd.f32 %v611, %v819
        %v836 = vadd.f32 %v612, %v820
        %v837 = vadd.f32 %v613, %v821
        %v838 = vadd.f32 %v614, %v822
        %v839 = vadd.f32 %v615, %v823
        %v840 = vadd.f32 %v616, %v824
        %v841 = vadd.f32 %v617, %v825
        %v842 = vadd.f32 %v618, %v826
        %v843 = vadd.f32 %v619, %v827
        %v844 = vadd.f32 %v620, %v828
        %v845 = vadd.f32 %v621, %v829
        %v846 = vadd.f32 %v622, %v830
        %v847 = vadd.f32 %v623, %v831
        %v848 = vadd.f32 %v624, %v832
        %v849 = vadd.f32 %v625, %v833
        %v850 = vadd.f32 %v626, %v834
        %v851 = vmul.f32 %v835, 0.5
        %v852 = vmul.f32 %v836, 0.5
        %v853 = vmul.f32 %v837, 0.5
        %v854 = vmul.f32 %v838, 0.5
        %v855 = vmul.f32 %v839, 0.5
        %v856 = vmul.f32 %v840, 0.5
        %v857 = vmul.f32 %v841, 0.5
        %v858 = vmul.f32 %v842, 0.5
        %v859 = vmul.f32 %v843, 0.5
        %v860 = vmul.f32 %v844, 0.5
        %v861 = vmul.f32 %v845, 0.5
        %v862 = vmul.f32 %v846, 0.5
        %v863 = vmul.f32 %v847, 0.5
        %v864 = vmul.f32 %v848, 0.5
        %v865 = vmul.f32 %v849, 0.5
        %v866 = vmul.f32 %v850, 0.5
        %v867 = vtanh.pop %v851
        %v868 = vtanh.pop %v852
        %v869 = vtanh.pop %v853
        %v870 = vtanh.pop %v854
        %v871 = vtanh.pop %v855
        %v872 = vtanh.pop %v856
        %v873 = vtanh.pop %v857
        %v874 = vtanh.pop %v858
        %v875 = vtanh.pop %v859
        %v876 = vtanh.pop %v860
        %v877 = vtanh.pop %v861
        %v878 = vtanh.pop %v862
        %v879 = vtanh.pop %v863
        %v880 = vtanh.pop %v864
        %v881 = vtanh.pop %v865
        %v882 = vtanh.pop %v866
        %v883 = vmul.f32 %v867, 0.5
        %v884 = vmul.f32 %v868, 0.5
        %v885 = vmul.f32 %v869, 0.5
        %v886 = vmul.f32 %v870, 0.5
        %v887 = vmul.f32 %v871, 0.5
        %v888 = vmul.f32 %v872, 0.5
        %v889 = vmul.f32 %v873, 0.5
        %v890 = vmul.f32 %v874, 0.5
        %v891 = vmul.f32 %v875, 0.5
        %v892 = vmul.f32 %v876, 0.5
        %v893 = vmul.f32 %v877, 0.5
        %v894 = vmul.f32 %v878, 0.5
        %v895 = vmul.f32 %v879, 0.5
        %v896 = vmul.f32 %v880, 0.5
        %v897 = vmul.f32 %v881, 0.5
        %v898 = vmul.f32 %v882, 0.5
        %v899 = vadd.f32 %v883, 0.5
        %v900 = vadd.f32 %v884, 0.5
        %v901 = vadd.f32 %v885, 0.5
        %v902 = vadd.f32 %v886, 0.5
        %v903 = vadd.f32 %v887, 0.5
        %v904 = vadd.f32 %v888, 0.5
        %v905 = vadd.f32 %v889, 0.5
        %v906 = vadd.f32 %v890, 0.5
        %v907 = vadd.f32 %v891, 0.5
        %v908 = vadd.f32 %v892, 0.5
        %v909 = vadd.f32 %v893, 0.5
        %v910 = vadd.f32 %v894, 0.5
        %v911 = vadd.f32 %v895, 0.5
        %v912 = vadd.f32 %v896, 0.5
        %v913 = vadd.f32 %v897, 0.5
        %v914 = vadd.f32 %v898, 0.5
        %v915 = vmul.f32 %v899, %v651
        %v916 = vmul.f32 %v900, %v652
        %v917 = vmul.f32 %v901, %v653
        %v918 = vmul.f32 %v902, %v654
        %v919 = vmul.f32 %v903, %v655
        %v920 = vmul.f32 %v904, %v656
        %v921 = vmul.f32 %v905, %v657
        %v922 = vmul.f32 %v906, %v658
        %v923 = vmul.f32 %v907, %v659
        %v924 = vmul.f32 %v908, %v660
        %v925 = vmul.f32 %v909, %v661
        %v926 = vmul.f32 %v910, %v662
        %v927 = vmul.f32 %v911, %v663
        %v928 = vmul.f32 %v912, %v664
        %v929 = vmul.f32 %v913, %v665
        %v930 = vmul.f32 %v914, %v666
        %v931 = vadd.f32 %v915, 0.0
        %v932 = vadd.f32 %v916, 0.0
        %v933 = vadd.f32 %v917, 0.0
        %v934 = vadd.f32 %v918, 0.0
        %v935 = vadd.f32 %v919, 0.0
        %v936 = vadd.f32 %v920, 0.0
        %v937 = vadd.f32 %v921, 0.0
        %v938 = vadd.f32 %v922, 0.0
        %v939 = vadd.f32 %v923, 0.0
        %v940 = vadd.f32 %v924, 0.0
        %v941 = vadd.f32 %v925, 0.0
        %v942 = vadd.f32 %v926, 0.0
        %v943 = vadd.f32 %v927, 0.0
        %v944 = vadd.f32 %v928, 0.0
        %v945 = vadd.f32 %v929, 0.0
        %v946 = vadd.f32 %v930, 0.0
        %s947 = scalar_lea.vmem %s240, 128 [#allocation7]
        %v948 = vld [vmem:[%s947] sm:$0xff]
        %v949 = vld [vmem:[%s947 + $0x8] sm:$0xff]
        %v950 = vld [vmem:[%s947 + $0x10] sm:$0xff]
        %v951 = vld [vmem:[%s947 + $0x18] sm:$0xff]
        %v952 = vld [vmem:[%s947 + $0x20] sm:$0xff]
        %v953 = vld [vmem:[%s947 + $0x28] sm:$0xff]
        %v954 = vld [vmem:[%s947 + $0x30] sm:$0xff]
        %v955 = vld [vmem:[%s947 + $0x38] sm:$0xff]
        %v956 = vld [vmem:[%s947 + $0x40] sm:$0xff]
        %v957 = vld [vmem:[%s947 + $0x48] sm:$0xff]
        %v958 = vld [vmem:[%s947 + $0x50] sm:$0xff]
        %v959 = vld [vmem:[%s947 + $0x58] sm:$0xff]
        %v960 = vld [vmem:[%s947 + $0x60] sm:$0xff]
        %v961 = vld [vmem:[%s947 + $0x68] sm:$0xff]
        %v962 = vld [vmem:[%s947 + $0x70] sm:$0xff]
        %v963 = vld [vmem:[%s947 + $0x78] sm:$0xff]
        %v964 = vadd.f32 %v948, %v949
        %965 = vadd.xlane.f32.xlu0 %v964
        %v966 = vpop.xlane.xlu0 %965
        %v967 = vadd.f32 %v950, %v951
        %968 = vadd.xlane.f32.xlu0 %v967
        %v969 = vpop.xlane.xlu0 %968
        %v970 = vadd.f32 %v952, %v953
        %971 = vadd.xlane.f32.xlu0 %v970
        %v972 = vpop.xlane.xlu0 %971
        %v973 = vadd.f32 %v954, %v955
        %974 = vadd.xlane.f32.xlu0 %v973
        %v975 = vpop.xlane.xlu0 %974
        %v976 = vadd.f32 %v956, %v957
        %977 = vadd.xlane.f32.xlu0 %v976
        %v978 = vpop.xlane.xlu0 %977
        %v979 = vadd.f32 %v958, %v959
        %980 = vadd.xlane.f32.xlu0 %v979
        %v981 = vpop.xlane.xlu0 %980
        %v982 = vadd.f32 %v960, %v961
        %983 = vadd.xlane.f32.xlu0 %v982
        %v984 = vpop.xlane.xlu0 %983
        %v985 = vadd.f32 %v962, %v963
        %986 = vadd.xlane.f32.xlu0 %v985
        %v987 = vpop.xlane.xlu0 %986
        %v988 = vmul.f32 %v966, 0.00390625
        %v989 = vmul.f32 %v969, 0.00390625
        %v990 = vmul.f32 %v972, 0.00390625
        %v991 = vmul.f32 %v975, 0.00390625
        %v992 = vmul.f32 %v978, 0.00390625
        %v993 = vmul.f32 %v981, 0.00390625
        %v994 = vmul.f32 %v984, 0.00390625
        %v995 = vmul.f32 %v987, 0.00390625
        %v996 = vmul.f32 %v948, %v948
        %v997 = vmul.f32 %v949, %v949
        %v998 = vmul.f32 %v950, %v950
        %v999 = vmul.f32 %v951, %v951
        %v1000 = vmul.f32 %v952, %v952
        %v1001 = vmul.f32 %v953, %v953
        %v1002 = vmul.f32 %v954, %v954
        %v1003 = vmul.f32 %v955, %v955
        %v1004 = vmul.f32 %v956, %v956
        %v1005 = vmul.f32 %v957, %v957
        %v1006 = vmul.f32 %v958, %v958
        %v1007 = vmul.f32 %v959, %v959
        %v1008 = vmul.f32 %v960, %v960
        %v1009 = vmul.f32 %v961, %v961
        %v1010 = vmul.f32 %v962, %v962
        %v1011 = vmul.f32 %v963, %v963
        %v1012 = vadd.f32 %v996, %v997
        %1013 = vadd.xlane.f32.xlu0 %v1012
        %v1014 = vpop.xlane.xlu0 %1013
        %v1015 = vadd.f32 %v998, %v999
        %1016 = vadd.xlane.f32.xlu0 %v1015
        %v1017 = vpop.xlane.xlu0 %1016
        %v1018 = vadd.f32 %v1000, %v1001
        %1019 = vadd.xlane.f32.xlu0 %v1018
        %v1020 = vpop.xlane.xlu0 %1019
        %v1021 = vadd.f32 %v1002, %v1003
        %1022 = vadd.xlane.f32.xlu0 %v1021
        %v1023 = vpop.xlane.xlu0 %1022
        %v1024 = vadd.f32 %v1004, %v1005
        %1025 = vadd.xlane.f32.xlu0 %v1024
        %v1026 = vpop.xlane.xlu0 %1025
        %v1027 = vadd.f32 %v1006, %v1007
        %1028 = vadd.xlane.f32.xlu0 %v1027
        %v1029 = vpop.xlane.xlu0 %1028
        %v1030 = vadd.f32 %v1008, %v1009
        %1031 = vadd.xlane.f32.xlu0 %v1030
        %v1032 = vpop.xlane.xlu0 %1031
        %v1033 = vadd.f32 %v1010, %v1011
        %1034 = vadd.xlane.f32.xlu0 %v1033
        %v1035 = vpop.xlane.xlu0 %1034
        %v1036 = vmul.f32 %v1014, 0.00390625
        %v1037 = vmul.f32 %v1017, 0.00390625
        %v1038 = vmul.f32 %v1020, 0.00390625
        %v1039 = vmul.f32 %v1023, 0.00390625
        %v1040 = vmul.f32 %v1026, 0.00390625
        %v1041 = vmul.f32 %v1029, 0.00390625
        %v1042 = vmul.f32 %v1032, 0.00390625
        %v1043 = vmul.f32 %v1035, 0.00390625
        %v1044 = vmul.f32 %v988, %v988
        %v1045 = vmul.f32 %v989, %v989
        %v1046 = vmul.f32 %v990, %v990
        %v1047 = vmul.f32 %v991, %v991
        %v1048 = vmul.f32 %v992, %v992
        %v1049 = vmul.f32 %v993, %v993
        %v1050 = vmul.f32 %v994, %v994
        %v1051 = vmul.f32 %v995, %v995
        %v1052 = vsub.f32 %v1036, %v1044
        %v1053 = vsub.f32 %v1037, %v1045
        %v1054 = vsub.f32 %v1038, %v1046
        %v1055 = vsub.f32 %v1039, %v1047
        %v1056 = vsub.f32 %v1040, %v1048
        %v1057 = vsub.f32 %v1041, %v1049
        %v1058 = vsub.f32 %v1042, %v1050
        %v1059 = vsub.f32 %v1043, %v1051
        %v1060 = vmax.f32 %v1052, 0.0
        %v1061 = vmax.f32 %v1053, 0.0
        %v1062 = vmax.f32 %v1054, 0.0
        %v1063 = vmax.f32 %v1055, 0.0
        %v1064 = vmax.f32 %v1056, 0.0
        %v1065 = vmax.f32 %v1057, 0.0
        %v1066 = vmax.f32 %v1058, 0.0
        %v1067 = vmax.f32 %v1059, 0.0
        %v1068 = vsub.f32 %v948, %v988
        %v1069 = vsub.f32 %v949, %v988
        %v1070 = vsub.f32 %v950, %v989
        %v1071 = vsub.f32 %v951, %v989
        %v1072 = vsub.f32 %v952, %v990
        %v1073 = vsub.f32 %v953, %v990
        %v1074 = vsub.f32 %v954, %v991
        %v1075 = vsub.f32 %v955, %v991
        %v1076 = vsub.f32 %v956, %v992
        %v1077 = vsub.f32 %v957, %v992
        %v1078 = vsub.f32 %v958, %v993
        %v1079 = vsub.f32 %v959, %v993
        %v1080 = vsub.f32 %v960, %v994
        %v1081 = vsub.f32 %v961, %v994
        %v1082 = vsub.f32 %v962, %v995
        %v1083 = vsub.f32 %v963, %v995
        %v1084 = vadd.f32 %v1060, 1e-05
        %v1085 = vadd.f32 %v1061, 1e-05
        %v1086 = vadd.f32 %v1062, 1e-05
        %v1087 = vadd.f32 %v1063, 1e-05
        %v1088 = vadd.f32 %v1064, 1e-05
        %v1089 = vadd.f32 %v1065, 1e-05
        %v1090 = vadd.f32 %v1066, 1e-05
        %v1091 = vadd.f32 %v1067, 1e-05
        %v1092 = vrsqrt.pop %v1084
        %v1093 = vrsqrt.pop %v1085
        %v1094 = vrsqrt.pop %v1086
        %v1095 = vrsqrt.pop %v1087
        %v1096 = vrsqrt.pop %v1088
        %v1097 = vrsqrt.pop %v1089
        %v1098 = vrsqrt.pop %v1090
        %v1099 = vrsqrt.pop %v1091
        %v1100 = vmul.f32 %v1068, %v1092
        %v1101 = vmul.f32 %v1069, %v1092
        %v1102 = vmul.f32 %v1070, %v1093
        %v1103 = vmul.f32 %v1071, %v1093
        %v1104 = vmul.f32 %v1072, %v1094
        %v1105 = vmul.f32 %v1073, %v1094
        %v1106 = vmul.f32 %v1074, %v1095
        %v1107 = vmul.f32 %v1075, %v1095
        %v1108 = vmul.f32 %v1076, %v1096
        %v1109 = vmul.f32 %v1077, %v1096
        %v1110 = vmul.f32 %v1078, %v1097
        %v1111 = vmul.f32 %v1079, %v1097
        %v1112 = vmul.f32 %v1080, %v1098
        %v1113 = vmul.f32 %v1081, %v1098
        %v1114 = vmul.f32 %v1082, %v1099
        %v1115 = vmul.f32 %v1083, %v1099
        %v1116 = vmul.f32 %v1100, %v635
        %v1117 = vmul.f32 %v1101, %v636
        %v1118 = vmul.f32 %v1102, %v637
        %v1119 = vmul.f32 %v1103, %v638
        %v1120 = vmul.f32 %v1104, %v639
        %v1121 = vmul.f32 %v1105, %v640
        %v1122 = vmul.f32 %v1106, %v641
        %v1123 = vmul.f32 %v1107, %v642
        %v1124 = vmul.f32 %v1108, %v643
        %v1125 = vmul.f32 %v1109, %v644
        %v1126 = vmul.f32 %v1110, %v645
        %v1127 = vmul.f32 %v1111, %v646
        %v1128 = vmul.f32 %v1112, %v647
        %v1129 = vmul.f32 %v1113, %v648
        %v1130 = vmul.f32 %v1114, %v649
        %v1131 = vmul.f32 %v1115, %v650
        %v1132 = vadd.f32 %v611, %v1116
        %v1133 = vadd.f32 %v612, %v1117
        %v1134 = vadd.f32 %v613, %v1118
        %v1135 = vadd.f32 %v614, %v1119
        %v1136 = vadd.f32 %v615, %v1120
        %v1137 = vadd.f32 %v616, %v1121
        %v1138 = vadd.f32 %v617, %v1122
        %v1139 = vadd.f32 %v618, %v1123
        %v1140 = vadd.f32 %v619, %v1124
        %v1141 = vadd.f32 %v620, %v1125
        %v1142 = vadd.f32 %v621, %v1126
        %v1143 = vadd.f32 %v622, %v1127
        %v1144 = vadd.f32 %v623, %v1128
        %v1145 = vadd.f32 %v624, %v1129
        %v1146 = vadd.f32 %v625, %v1130
        %v1147 = vadd.f32 %v626, %v1131
        %v1148 = vmul.f32 %v1132, 0.5
        %v1149 = vmul.f32 %v1133, 0.5
        %v1150 = vmul.f32 %v1134, 0.5
        %v1151 = vmul.f32 %v1135, 0.5
        %v1152 = vmul.f32 %v1136, 0.5
        %v1153 = vmul.f32 %v1137, 0.5
        %v1154 = vmul.f32 %v1138, 0.5
        %v1155 = vmul.f32 %v1139, 0.5
        %v1156 = vmul.f32 %v1140, 0.5
        %v1157 = vmul.f32 %v1141, 0.5
        %v1158 = vmul.f32 %v1142, 0.5
        %v1159 = vmul.f32 %v1143, 0.5
        %v1160 = vmul.f32 %v1144, 0.5
        %v1161 = vmul.f32 %v1145, 0.5
        %v1162 = vmul.f32 %v1146, 0.5
        %v1163 = vmul.f32 %v1147, 0.5
        %v1164 = vtanh.pop %v1148
        %v1165 = vtanh.pop %v1149
        %v1166 = vtanh.pop %v1150
        %v1167 = vtanh.pop %v1151
        %v1168 = vtanh.pop %v1152
        %v1169 = vtanh.pop %v1153
        %v1170 = vtanh.pop %v1154
        %v1171 = vtanh.pop %v1155
        %v1172 = vtanh.pop %v1156
        %v1173 = vtanh.pop %v1157
        %v1174 = vtanh.pop %v1158
        %v1175 = vtanh.pop %v1159
        %v1176 = vtanh.pop %v1160
        %v1177 = vtanh.pop %v1161
        %v1178 = vtanh.pop %v1162
        %v1179 = vtanh.pop %v1163
        %v1180 = vmul.f32 %v1164, 0.5
        %v1181 = vmul.f32 %v1165, 0.5
        %v1182 = vmul.f32 %v1166, 0.5
        %v1183 = vmul.f32 %v1167, 0.5
        %v1184 = vmul.f32 %v1168, 0.5
        %v1185 = vmul.f32 %v1169, 0.5
        %v1186 = vmul.f32 %v1170, 0.5
        %v1187 = vmul.f32 %v1171, 0.5
        %v1188 = vmul.f32 %v1172, 0.5
        %v1189 = vmul.f32 %v1173, 0.5
        %v1190 = vmul.f32 %v1174, 0.5
        %v1191 = vmul.f32 %v1175, 0.5
        %v1192 = vmul.f32 %v1176, 0.5
        %v1193 = vmul.f32 %v1177, 0.5
        %v1194 = vmul.f32 %v1178, 0.5
        %v1195 = vmul.f32 %v1179, 0.5
        %v1196 = vadd.f32 %v1180, 0.5
        %v1197 = vadd.f32 %v1181, 0.5
        %v1198 = vadd.f32 %v1182, 0.5
        %v1199 = vadd.f32 %v1183, 0.5
        %v1200 = vadd.f32 %v1184, 0.5
        %v1201 = vadd.f32 %v1185, 0.5
        %v1202 = vadd.f32 %v1186, 0.5
        %v1203 = vadd.f32 %v1187, 0.5
        %v1204 = vadd.f32 %v1188, 0.5
        %v1205 = vadd.f32 %v1189, 0.5
        %v1206 = vadd.f32 %v1190, 0.5
        %v1207 = vadd.f32 %v1191, 0.5
        %v1208 = vadd.f32 %v1192, 0.5
        %v1209 = vadd.f32 %v1193, 0.5
        %v1210 = vadd.f32 %v1194, 0.5
        %v1211 = vadd.f32 %v1195, 0.5
        %v1212 = vmul.f32 %v1196, %v948
        %v1213 = vmul.f32 %v1197, %v949
        %v1214 = vmul.f32 %v1198, %v950
        %v1215 = vmul.f32 %v1199, %v951
        %v1216 = vmul.f32 %v1200, %v952
        %v1217 = vmul.f32 %v1201, %v953
        %v1218 = vmul.f32 %v1202, %v954
        %v1219 = vmul.f32 %v1203, %v955
        %v1220 = vmul.f32 %v1204, %v956
        %v1221 = vmul.f32 %v1205, %v957
        %v1222 = vmul.f32 %v1206, %v958
        %v1223 = vmul.f32 %v1207, %v959
        %v1224 = vmul.f32 %v1208, %v960
        %v1225 = vmul.f32 %v1209, %v961
        %v1226 = vmul.f32 %v1210, %v962
        %v1227 = vmul.f32 %v1211, %v963
        %v1228 = vadd.f32 %v931, %v1212
        %v1229 = vadd.f32 %v932, %v1213
        %v1230 = vadd.f32 %v933, %v1214
        %v1231 = vadd.f32 %v934, %v1215
        %v1232 = vadd.f32 %v935, %v1216
        %v1233 = vadd.f32 %v936, %v1217
        %v1234 = vadd.f32 %v937, %v1218
        %v1235 = vadd.f32 %v938, %v1219
        %v1236 = vadd.f32 %v939, %v1220
        %v1237 = vadd.f32 %v940, %v1221
        %v1238 = vadd.f32 %v941, %v1222
        %v1239 = vadd.f32 %v942, %v1223
        %v1240 = vadd.f32 %v943, %v1224
        %v1241 = vadd.f32 %v944, %v1225
        %v1242 = vadd.f32 %v945, %v1226
        %v1243 = vadd.f32 %v946, %v1227
        %s1244 = scalar_lea.vmem %s240, 256 [#allocation7]
        %v1245 = vld [vmem:[%s1244] sm:$0xff]
        %v1246 = vld [vmem:[%s1244 + $0x8] sm:$0xff]
        %v1247 = vld [vmem:[%s1244 + $0x10] sm:$0xff]
        %v1248 = vld [vmem:[%s1244 + $0x18] sm:$0xff]
        %v1249 = vld [vmem:[%s1244 + $0x20] sm:$0xff]
        %v1250 = vld [vmem:[%s1244 + $0x28] sm:$0xff]
        %v1251 = vld [vmem:[%s1244 + $0x30] sm:$0xff]
        %v1252 = vld [vmem:[%s1244 + $0x38] sm:$0xff]
        %v1253 = vld [vmem:[%s1244 + $0x40] sm:$0xff]
        %v1254 = vld [vmem:[%s1244 + $0x48] sm:$0xff]
        %v1255 = vld [vmem:[%s1244 + $0x50] sm:$0xff]
        %v1256 = vld [vmem:[%s1244 + $0x58] sm:$0xff]
        %v1257 = vld [vmem:[%s1244 + $0x60] sm:$0xff]
        %v1258 = vld [vmem:[%s1244 + $0x68] sm:$0xff]
        %v1259 = vld [vmem:[%s1244 + $0x70] sm:$0xff]
        %v1260 = vld [vmem:[%s1244 + $0x78] sm:$0xff]
        %v1261 = vadd.f32 %v1245, %v1246
        %1262 = vadd.xlane.f32.xlu0 %v1261
        %v1263 = vpop.xlane.xlu0 %1262
        %v1264 = vadd.f32 %v1247, %v1248
        %1265 = vadd.xlane.f32.xlu0 %v1264
        %v1266 = vpop.xlane.xlu0 %1265
        %v1267 = vadd.f32 %v1249, %v1250
        %1268 = vadd.xlane.f32.xlu0 %v1267
        %v1269 = vpop.xlane.xlu0 %1268
        %v1270 = vadd.f32 %v1251, %v1252
        %1271 = vadd.xlane.f32.xlu0 %v1270
        %v1272 = vpop.xlane.xlu0 %1271
        %v1273 = vadd.f32 %v1253, %v1254
        %1274 = vadd.xlane.f32.xlu0 %v1273
        %v1275 = vpop.xlane.xlu0 %1274
        %v1276 = vadd.f32 %v1255, %v1256
        %1277 = vadd.xlane.f32.xlu0 %v1276
        %v1278 = vpop.xlane.xlu0 %1277
        %v1279 = vadd.f32 %v1257, %v1258
        %1280 = vadd.xlane.f32.xlu0 %v1279
        %v1281 = vpop.xlane.xlu0 %1280
        %v1282 = vadd.f32 %v1259, %v1260
        %1283 = vadd.xlane.f32.xlu0 %v1282
        %v1284 = vpop.xlane.xlu0 %1283
        %v1285 = vmul.f32 %v1263, 0.00390625
        %v1286 = vmul.f32 %v1266, 0.00390625
        %v1287 = vmul.f32 %v1269, 0.00390625
        %v1288 = vmul.f32 %v1272, 0.00390625
        %v1289 = vmul.f32 %v1275, 0.00390625
        %v1290 = vmul.f32 %v1278, 0.00390625
        %v1291 = vmul.f32 %v1281, 0.00390625
        %v1292 = vmul.f32 %v1284, 0.00390625
        %v1293 = vmul.f32 %v1245, %v1245
        %v1294 = vmul.f32 %v1246, %v1246
        %v1295 = vmul.f32 %v1247, %v1247
        %v1296 = vmul.f32 %v1248, %v1248
        %v1297 = vmul.f32 %v1249, %v1249
        %v1298 = vmul.f32 %v1250, %v1250
        %v1299 = vmul.f32 %v1251, %v1251
        %v1300 = vmul.f32 %v1252, %v1252
        %v1301 = vmul.f32 %v1253, %v1253
        %v1302 = vmul.f32 %v1254, %v1254
        %v1303 = vmul.f32 %v1255, %v1255
        %v1304 = vmul.f32 %v1256, %v1256
        %v1305 = vmul.f32 %v1257, %v1257
        %v1306 = vmul.f32 %v1258, %v1258
        %v1307 = vmul.f32 %v1259, %v1259
        %v1308 = vmul.f32 %v1260, %v1260
        %v1309 = vadd.f32 %v1293, %v1294
        %1310 = vadd.xlane.f32.xlu0 %v1309
        %v1311 = vpop.xlane.xlu0 %1310
        %v1312 = vadd.f32 %v1295, %v1296
        %1313 = vadd.xlane.f32.xlu0 %v1312
        %v1314 = vpop.xlane.xlu0 %1313
        %v1315 = vadd.f32 %v1297, %v1298
        %1316 = vadd.xlane.f32.xlu0 %v1315
        %v1317 = vpop.xlane.xlu0 %1316
        %v1318 = vadd.f32 %v1299, %v1300
        %1319 = vadd.xlane.f32.xlu0 %v1318
        %v1320 = vpop.xlane.xlu0 %1319
        %v1321 = vadd.f32 %v1301, %v1302
        %1322 = vadd.xlane.f32.xlu0 %v1321
        %v1323 = vpop.xlane.xlu0 %1322
        %v1324 = vadd.f32 %v1303, %v1304
        %1325 = vadd.xlane.f32.xlu0 %v1324
        %v1326 = vpop.xlane.xlu0 %1325
        %v1327 = vadd.f32 %v1305, %v1306
        %1328 = vadd.xlane.f32.xlu0 %v1327
        %v1329 = vpop.xlane.xlu0 %1328
        %v1330 = vadd.f32 %v1307, %v1308
        %1331 = vadd.xlane.f32.xlu0 %v1330
        %v1332 = vpop.xlane.xlu0 %1331
        %v1333 = vmul.f32 %v1311, 0.00390625
        %v1334 = vmul.f32 %v1314, 0.00390625
        %v1335 = vmul.f32 %v1317, 0.00390625
        %v1336 = vmul.f32 %v1320, 0.00390625
        %v1337 = vmul.f32 %v1323, 0.00390625
        %v1338 = vmul.f32 %v1326, 0.00390625
        %v1339 = vmul.f32 %v1329, 0.00390625
        %v1340 = vmul.f32 %v1332, 0.00390625
        %v1341 = vmul.f32 %v1285, %v1285
        %v1342 = vmul.f32 %v1286, %v1286
        %v1343 = vmul.f32 %v1287, %v1287
        %v1344 = vmul.f32 %v1288, %v1288
        %v1345 = vmul.f32 %v1289, %v1289
        %v1346 = vmul.f32 %v1290, %v1290
        %v1347 = vmul.f32 %v1291, %v1291
        %v1348 = vmul.f32 %v1292, %v1292
        %v1349 = vsub.f32 %v1333, %v1341
        %v1350 = vsub.f32 %v1334, %v1342
        %v1351 = vsub.f32 %v1335, %v1343
        %v1352 = vsub.f32 %v1336, %v1344
        %v1353 = vsub.f32 %v1337, %v1345
        %v1354 = vsub.f32 %v1338, %v1346
        %v1355 = vsub.f32 %v1339, %v1347
        %v1356 = vsub.f32 %v1340, %v1348
        %v1357 = vmax.f32 %v1349, 0.0
        %v1358 = vmax.f32 %v1350, 0.0
        %v1359 = vmax.f32 %v1351, 0.0
        %v1360 = vmax.f32 %v1352, 0.0
        %v1361 = vmax.f32 %v1353, 0.0
        %v1362 = vmax.f32 %v1354, 0.0
        %v1363 = vmax.f32 %v1355, 0.0
        %v1364 = vmax.f32 %v1356, 0.0
        %v1365 = vsub.f32 %v1245, %v1285
        %v1366 = vsub.f32 %v1246, %v1285
        %v1367 = vsub.f32 %v1247, %v1286
        %v1368 = vsub.f32 %v1248, %v1286
        %v1369 = vsub.f32 %v1249, %v1287
        %v1370 = vsub.f32 %v1250, %v1287
        %v1371 = vsub.f32 %v1251, %v1288
        %v1372 = vsub.f32 %v1252, %v1288
        %v1373 = vsub.f32 %v1253, %v1289
        %v1374 = vsub.f32 %v1254, %v1289
        %v1375 = vsub.f32 %v1255, %v1290
        %v1376 = vsub.f32 %v1256, %v1290
        %v1377 = vsub.f32 %v1257, %v1291
        %v1378 = vsub.f32 %v1258, %v1291
        %v1379 = vsub.f32 %v1259, %v1292
        %v1380 = vsub.f32 %v1260, %v1292
        %v1381 = vadd.f32 %v1357, 1e-05
        %v1382 = vadd.f32 %v1358, 1e-05
        %v1383 = vadd.f32 %v1359, 1e-05
        %v1384 = vadd.f32 %v1360, 1e-05
        %v1385 = vadd.f32 %v1361, 1e-05
        %v1386 = vadd.f32 %v1362, 1e-05
        %v1387 = vadd.f32 %v1363, 1e-05
        %v1388 = vadd.f32 %v1364, 1e-05
        %v1389 = vrsqrt.pop %v1381
        %v1390 = vrsqrt.pop %v1382
        %v1391 = vrsqrt.pop %v1383
        %v1392 = vrsqrt.pop %v1384
        %v1393 = vrsqrt.pop %v1385
        %v1394 = vrsqrt.pop %v1386
        %v1395 = vrsqrt.pop %v1387
        %v1396 = vrsqrt.pop %v1388
        %v1397 = vmul.f32 %v1365, %v1389
        %v1398 = vmul.f32 %v1366, %v1389
        %v1399 = vmul.f32 %v1367, %v1390
        %v1400 = vmul.f32 %v1368, %v1390
        %v1401 = vmul.f32 %v1369, %v1391
        %v1402 = vmul.f32 %v1370, %v1391
        %v1403 = vmul.f32 %v1371, %v1392
        %v1404 = vmul.f32 %v1372, %v1392
        %v1405 = vmul.f32 %v1373, %v1393
        %v1406 = vmul.f32 %v1374, %v1393
        %v1407 = vmul.f32 %v1375, %v1394
        %v1408 = vmul.f32 %v1376, %v1394
        %v1409 = vmul.f32 %v1377, %v1395
        %v1410 = vmul.f32 %v1378, %v1395
        %v1411 = vmul.f32 %v1379, %v1396
        %v1412 = vmul.f32 %v1380, %v1396
        %v1413 = vmul.f32 %v1397, %v635
        %v1414 = vmul.f32 %v1398, %v636
        %v1415 = vmul.f32 %v1399, %v637
        %v1416 = vmul.f32 %v1400, %v638
        %v1417 = vmul.f32 %v1401, %v639
        %v1418 = vmul.f32 %v1402, %v640
        %v1419 = vmul.f32 %v1403, %v641
        %v1420 = vmul.f32 %v1404, %v642
        %v1421 = vmul.f32 %v1405, %v643
        %v1422 = vmul.f32 %v1406, %v644
        %v1423 = vmul.f32 %v1407, %v645
        %v1424 = vmul.f32 %v1408, %v646
        %v1425 = vmul.f32 %v1409, %v647
        %v1426 = vmul.f32 %v1410, %v648
        %v1427 = vmul.f32 %v1411, %v649
        %v1428 = vmul.f32 %v1412, %v650
        %v1429 = vadd.f32 %v611, %v1413
        %v1430 = vadd.f32 %v612, %v1414
        %v1431 = vadd.f32 %v613, %v1415
        %v1432 = vadd.f32 %v614, %v1416
        %v1433 = vadd.f32 %v615, %v1417
        %v1434 = vadd.f32 %v616, %v1418
        %v1435 = vadd.f32 %v617, %v1419
        %v1436 = vadd.f32 %v618, %v1420
        %v1437 = vadd.f32 %v619, %v1421
        %v1438 = vadd.f32 %v620, %v1422
        %v1439 = vadd.f32 %v621, %v1423
        %v1440 = vadd.f32 %v622, %v1424
        %v1441 = vadd.f32 %v623, %v1425
        %v1442 = vadd.f32 %v624, %v1426
        %v1443 = vadd.f32 %v625, %v1427
        %v1444 = vadd.f32 %v626, %v1428
        %v1445 = vmul.f32 %v1429, 0.5
        %v1446 = vmul.f32 %v1430, 0.5
        %v1447 = vmul.f32 %v1431, 0.5
        %v1448 = vmul.f32 %v1432, 0.5
        %v1449 = vmul.f32 %v1433, 0.5
        %v1450 = vmul.f32 %v1434, 0.5
        %v1451 = vmul.f32 %v1435, 0.5
        %v1452 = vmul.f32 %v1436, 0.5
        %v1453 = vmul.f32 %v1437, 0.5
        %v1454 = vmul.f32 %v1438, 0.5
        %v1455 = vmul.f32 %v1439, 0.5
        %v1456 = vmul.f32 %v1440, 0.5
        %v1457 = vmul.f32 %v1441, 0.5
        %v1458 = vmul.f32 %v1442, 0.5
        %v1459 = vmul.f32 %v1443, 0.5
        %v1460 = vmul.f32 %v1444, 0.5
        %v1461 = vtanh.pop %v1445
        %v1462 = vtanh.pop %v1446
        %v1463 = vtanh.pop %v1447
        %v1464 = vtanh.pop %v1448
        %v1465 = vtanh.pop %v1449
        %v1466 = vtanh.pop %v1450
        %v1467 = vtanh.pop %v1451
        %v1468 = vtanh.pop %v1452
        %v1469 = vtanh.pop %v1453
        %v1470 = vtanh.pop %v1454
        %v1471 = vtanh.pop %v1455
        %v1472 = vtanh.pop %v1456
        %v1473 = vtanh.pop %v1457
        %v1474 = vtanh.pop %v1458
        %v1475 = vtanh.pop %v1459
        %v1476 = vtanh.pop %v1460
        %v1477 = vmul.f32 %v1461, 0.5
        %v1478 = vmul.f32 %v1462, 0.5
        %v1479 = vmul.f32 %v1463, 0.5
        %v1480 = vmul.f32 %v1464, 0.5
        %v1481 = vmul.f32 %v1465, 0.5
        %v1482 = vmul.f32 %v1466, 0.5
        %v1483 = vmul.f32 %v1467, 0.5
        %v1484 = vmul.f32 %v1468, 0.5
        %v1485 = vmul.f32 %v1469, 0.5
        %v1486 = vmul.f32 %v1470, 0.5
        %v1487 = vmul.f32 %v1471, 0.5
        %v1488 = vmul.f32 %v1472, 0.5
        %v1489 = vmul.f32 %v1473, 0.5
        %v1490 = vmul.f32 %v1474, 0.5
        %v1491 = vmul.f32 %v1475, 0.5
        %v1492 = vmul.f32 %v1476, 0.5
        %v1493 = vadd.f32 %v1477, 0.5
        %v1494 = vadd.f32 %v1478, 0.5
        %v1495 = vadd.f32 %v1479, 0.5
        %v1496 = vadd.f32 %v1480, 0.5
        %v1497 = vadd.f32 %v1481, 0.5
        %v1498 = vadd.f32 %v1482, 0.5
        %v1499 = vadd.f32 %v1483, 0.5
        %v1500 = vadd.f32 %v1484, 0.5
        %v1501 = vadd.f32 %v1485, 0.5
        %v1502 = vadd.f32 %v1486, 0.5
        %v1503 = vadd.f32 %v1487, 0.5
        %v1504 = vadd.f32 %v1488, 0.5
        %v1505 = vadd.f32 %v1489, 0.5
        %v1506 = vadd.f32 %v1490, 0.5
        %v1507 = vadd.f32 %v1491, 0.5
        %v1508 = vadd.f32 %v1492, 0.5
        %v1509 = vmul.f32 %v1493, %v1245
        %v1510 = vmul.f32 %v1494, %v1246
        %v1511 = vmul.f32 %v1495, %v1247
        %v1512 = vmul.f32 %v1496, %v1248
        %v1513 = vmul.f32 %v1497, %v1249
        %v1514 = vmul.f32 %v1498, %v1250
        %v1515 = vmul.f32 %v1499, %v1251
        %v1516 = vmul.f32 %v1500, %v1252
        %v1517 = vmul.f32 %v1501, %v1253
        %v1518 = vmul.f32 %v1502, %v1254
        %v1519 = vmul.f32 %v1503, %v1255
        %v1520 = vmul.f32 %v1504, %v1256
        %v1521 = vmul.f32 %v1505, %v1257
        %v1522 = vmul.f32 %v1506, %v1258
        %v1523 = vmul.f32 %v1507, %v1259
        %v1524 = vmul.f32 %v1508, %v1260
        %v1525 = vadd.f32 %v1228, %v1509
        %v1526 = vadd.f32 %v1229, %v1510
        %v1527 = vadd.f32 %v1230, %v1511
        %v1528 = vadd.f32 %v1231, %v1512
        %v1529 = vadd.f32 %v1232, %v1513
        %v1530 = vadd.f32 %v1233, %v1514
        %v1531 = vadd.f32 %v1234, %v1515
        %v1532 = vadd.f32 %v1235, %v1516
        %v1533 = vadd.f32 %v1236, %v1517
        %v1534 = vadd.f32 %v1237, %v1518
        %v1535 = vadd.f32 %v1238, %v1519
        %v1536 = vadd.f32 %v1239, %v1520
        %v1537 = vadd.f32 %v1240, %v1521
        %v1538 = vadd.f32 %v1241, %v1522
        %v1539 = vadd.f32 %v1242, %v1523
        %v1540 = vadd.f32 %v1243, %v1524
        %v1541 = vlaneseq
        %v1542 = vshrl.u32 %v1541, 7
        %v1543 = vsub.s32 3, %v1542
        %v1544 = vrot.slane %v271, %v1543
        %v1545 = vlaneseq
        %v1546 = vshrl.u32 %v1545, 7
        %v1547 = vsub.s32 3, %v1546
        %v1548 = vrot.slane %v272, %v1547
        %v1549 = vmul.f32 %v1544, %v1525
        %v1550 = vmul.f32 %v1548, %v1526
        %v1551 = vmul.f32 %v1544, %v1527
        %v1552 = vmul.f32 %v1548, %v1528
        %v1553 = vmul.f32 %v1544, %v1529
        %v1554 = vmul.f32 %v1548, %v1530
        %v1555 = vmul.f32 %v1544, %v1531
        %v1556 = vmul.f32 %v1548, %v1532
        %v1557 = vmul.f32 %v1544, %v1533
        %v1558 = vmul.f32 %v1548, %v1534
        %v1559 = vmul.f32 %v1544, %v1535
        %v1560 = vmul.f32 %v1548, %v1536
        %v1561 = vmul.f32 %v1544, %v1537
        %v1562 = vmul.f32 %v1548, %v1538
        %v1563 = vmul.f32 %v1544, %v1539
        %v1564 = vmul.f32 %v1548, %v1540
        %v1565 = vadd.f32 %v275, %v1549
        %v1566 = vadd.f32 %v276, %v1550
        %v1567 = vadd.f32 %v277, %v1551
        %v1568 = vadd.f32 %v278, %v1552
        %v1569 = vadd.f32 %v279, %v1553
        %v1570 = vadd.f32 %v280, %v1554
        %v1571 = vadd.f32 %v281, %v1555
        %v1572 = vadd.f32 %v282, %v1556
        %v1573 = vadd.f32 %v283, %v1557
        %v1574 = vadd.f32 %v284, %v1558
        %v1575 = vadd.f32 %v285, %v1559
        %v1576 = vadd.f32 %v286, %v1560
        %v1577 = vadd.f32 %v287, %v1561
        %v1578 = vadd.f32 %v288, %v1562
        %v1579 = vadd.f32 %v289, %v1563
        %v1580 = vadd.f32 %v290, %v1564
        %1581 = vst [vmem:[%s267] sm:$0xff] %v1565
        %1582 = vst [vmem:[%s267 + $0x8] sm:$0xff] %v1566
        %1583 = vst [vmem:[%s267 + $0x10] sm:$0xff] %v1567
        %1584 = vst [vmem:[%s267 + $0x18] sm:$0xff] %v1568
        %1585 = vst [vmem:[%s267 + $0x20] sm:$0xff] %v1569
        %1586 = vst [vmem:[%s267 + $0x28] sm:$0xff] %v1570
        %1587 = vst [vmem:[%s267 + $0x30] sm:$0xff] %v1571
        %1588 = vst [vmem:[%s267 + $0x38] sm:$0xff] %v1572
        %1589 = vst [vmem:[%s267 + $0x40] sm:$0xff] %v1573
        %1590 = vst [vmem:[%s267 + $0x48] sm:$0xff] %v1574
        %1591 = vst [vmem:[%s267 + $0x50] sm:$0xff] %v1575
        %1592 = vst [vmem:[%s267 + $0x58] sm:$0xff] %v1576
        %1593 = vst [vmem:[%s267 + $0x60] sm:$0xff] %v1577
        %1594 = vst [vmem:[%s267 + $0x68] sm:$0xff] %v1578
        %1595 = vst [vmem:[%s267 + $0x70] sm:$0xff] %v1579
        %1596 = vst [vmem:[%s267 + $0x78] sm:$0xff] %v1580
        %s1597 = sand.u32 %s102, 1
        %s1598 = scalar_lea.sflag [#allocation4], %s1597
        %s1599 = sand.u32 %s102, 1
        %s1600 = smul.addr %s1599, 128
        %s1601 = scalar_lea.vmem [#allocation8], %s1600
        // Predicated region
        $region45: #{tpu_custom_call.1} parent=31 // pred_check
          %p1602 = pneg %p112
        $region46: #{tpu_custom_call.1} parent=31 // pred_check_branch
          %1604 = sbr.rel (%p1602) target = $region48
        $region47: #{tpu_custom_call.1} parent=31 // pred_region
          %s1605 = smul.u32 8, %s21
          %s1607 = ssub.s32 2048, 2048
          %1608 = vsyncadd %s1598, %s1607
          %s1609 = smul.addr %s1605, 2
          %s1610 = smul.addr %s1609, 128
          %s1611 = scalar_lea.hbm %s3, %s1610
          %s1612 = sshll.u32 %s1601, 4
          %s1613 = int_to_ptr.vmem [resolvable:$true] %s1612
          %1618 = dma.vmem_to_hbm [thread:$0]  %s1613, 2048, %s1611, %s1598, 256, 256, 16
        $region48: #{tpu_custom_call.1} parent=31 // pred_fallthru
          _
      $region32: #{tpu_custom_call.1} parent=5 // pred_fallthru
        _
      %p1619 = scmp.le.s32.totalorder 2, %s16
      // Predicated region
      $region49: #{tpu_custom_call.1} parent=5 // pred_check
        %p1620 = pneg %p1619
      $region50: #{tpu_custom_call.1} parent=5 // pred_check_branch
        %1622 = sbr.rel (%p1620) target = $region52
      $region51: #{tpu_custom_call.1} parent=5 // pred_region
        %s1623 = ssub.s32 %s16, 2
        // Predicated region
        $region53: #{tpu_custom_call.1} parent=51 // pred_check
          %p1624 = pneg %p118
        $region54: #{tpu_custom_call.1} parent=51 // pred_check_branch
          %1626 = sbr.rel (%p1624) target = $region56
        $region55: #{tpu_custom_call.1} parent=51 // pred_region
          %s1627 = sand.u32 %s103, 1
          %s1628 = scalar_lea.sflag [#allocation4], %s1627
          %s1629 = sand.u32 %s103, 1
          %s1630 = smul.addr %s1629, 128
          %s1631 = scalar_lea.vmem [#allocation8], %s1630
          %1632 = dma.done %s1628, 2048
        $region56: #{tpu_custom_call.1} parent=51 // pred_fallthru
          _
      $region52: #{tpu_custom_call.1} parent=5 // pred_fallthru
        _
    $region6: #{tpu_custom_call.1} parent=1 // loop_footer
      %s20 = sadd.s32 1, %s16
    $region7: #{tpu_custom_call.1} parent=1 // loop_footer_branch
      %15 = sbr.rel target = $region3
    $region8: #{tpu_custom_call.1} parent=1 // loop_exit
      _
    %1633 = vsyncpa [#allocation3], 1
    %s1634 = scalar_lea.sflag [#allocation3], 1
    %1635 = vsyncpa %s1634, 1
    %1636 = vsyncpa [#allocation6], 1
    %s1637 = scalar_lea.sflag [#allocation6], 1
    %1638 = vsyncpa %s1637, 1
    %1639 = vsyncpa [#allocation4], 1
    %s1640 = scalar_lea.sflag [#allocation4], 1
    %1641 = vsyncpa %s1640, 1

</llo_original>
